<compile_context>
chip_gen: v6e
topology: v6e:2x2x1
jax: 0.10.0
libtpu: 0.0.40
codegen_flags: <defaults>
</compile_context>

<pallas_src>
import jax
import jax.numpy as jnp
from jax.experimental import pallas as pl
from jax.experimental.pallas import tpu as pltpu


def _update_net_kernel(tok_ref, w_ref, b_ref, trig_ref, mask_ref, tgt_ref,
                       wm_ref, loss_ref):
    """One grid step = TB batch elements.

    tok_ref  : (TB*N, C)      bf16 tokens (batch tile, flattened)
    w_ref    : (C, 2*H*P)     bf16 permuted/duplicated proj weight [K_dup | V]
    b_ref    : (1, 2*H*P)     f32 permuted bias
    trig_ref : (N, H*P)       f32 fused cos|sin table (K_dup lane layout)
    mask_ref : (H*P, H*P)     f32 block-diagonal head selector (precomputed)
    tgt_ref  : (TB, P, H*P)   bf16 target in kernel layout
    wm_ref   : (TB, P, H*P)   f32 output weight matrix (lane-dense slab)
    loss_ref : (1, 8, 128)    f32 lane-parallel |diff| partial sum
    """
    TB, P, HP = wm_ref.shape
    H = HP // P
    TBN = tok_ref.shape[0]
    N = TBN // TB

    # (1) One full-width projection matmul on the MXU: bf16 in, f32 accumulate.
    kv = jnp.dot(tok_ref[...], w_ref[...],
                 preferred_element_type=jnp.float32) + b_ref[...]     # (TBN, 2*HP)

    # (2) Aligned 128-wide sections: duplicated-k | v.  SiLU + fused cos|sin
    #     positional modulation (f32 elementwise; sigmoid on the EUP).  The
    #     (N, HP) trig table broadcasts over the TB axis in-register.
    kd = kv[:, :HP].reshape(TB, N, HP)
    va = kv[:, HP:].reshape(TB, N, HP)
    kk = kd * jax.nn.sigmoid(kd) * trig_ref[...]                      # (TB, N, HP)

    # (3) One batched full-width MXU outer product (all heads fused).
    big = jnp.einsum('bnd,bne->bde',
                     kk.astype(jnp.bfloat16), va.astype(jnp.bfloat16),
                     preferred_element_type=jnp.float32)              # (TB, HP, HP)
    # Keep only the per-head diagonal (P,P) blocks (VMEM-resident constant
    # mask, no iota/select) and fold them into a lane-dense (P, H*P) slab:
    #   folded[b, i, h*P + j] = big[b, h*P + i, h*P + j].
    folded = (big * mask_ref[...]).reshape(TB, H, P, HP).sum(axis=1)  # (TB, P, HP)
    wm_ref[...] = folded

    # (4) Loss partial from the in-register fold (no wm_ref reload), emitted as
    #     a lane-parallel (8,128) slab: pure VALU adds, final reduce moves to
    #     the wrapper.  Per-step partials keep the batch axis "parallel".
    diff = jnp.abs(tgt_ref[...].astype(jnp.float32) - folded)         # (TB, P, HP)
    loss_ref[0] = diff.reshape(-1, 8, 128).sum(axis=0)


def _default_tile_rows():
    """256-row tiles fill the 256-row MXU on v6e/v7x; 128 matches v5e."""
    try:
        kind = jax.devices()[0].device_kind.lower()
    except Exception:
        return 128
    return 256 if ("v6" in kind or "v7" in kind) else 128


def _pick_tb(B, N, target_rows):
    """Batch-tile size TB: divisor of B, (TB*N) % 8 == 0, TB*N <= target_rows.

    Prefers TB <= B//2 so the grid has >= 2 steps (v7x's second TensorCore
    gets work under the 'parallel' batch axis); falls back to the full batch
    (full-extent first-dim block is always a legal BlockSpec).
    """
    def ok(tb):
        return B % tb == 0 and (tb * N) % 8 == 0 and tb * N <= target_rows

    cands = [tb for tb in range(1, max(B // 2, 1) + 1) if ok(tb)]
    if not cands:
        cands = [tb for tb in range(1, B + 1) if ok(tb)]
    if cands:
        return max(cands)
    return B  # TODO(synk): pad N to a multiple of 8 instead of a single step.


def update_net_forward(token, target, W, b, theta, num_h_patch, *, tile_rows=None):
    """Pallas implementation of UpdateNet.forward (cosine variant).

    token  : (B, N, C)
    target : (B, P*P, C)
    W      : (C, out_dim) with out_dim = C * 3/2 * P  (transposed Linear weight)
    b      : (out_dim,)
    theta  : (C, 1, P//2) registered buffer
    returns (weight_matrix (B, P*P, C), loss scalar)
    """
    B, N, C = token.shape
    P = num_h_patch
    H = C
    khalf = P // 2
    d_head = khalf + P          # per-head projected width in the original W
    HP = H * P

    assert HP % 128 == 0, "kernel assumes C*P is a multiple of 128"  # TODO(synk): pad
    if tile_rows is None:
        tile_rows = _default_tile_rows()

    TB = _pick_tb(B, N, tile_rows)
    nsteps = B // TB
    TBN = TB * N
    assert (TB * P * HP) % 1024 == 0, "lane-parallel loss partial needs /1024"

    # ---- wrapper-side layout glue (cheap, one-time XLA ops) ----------------
    # Column permutation + k-duplication: new layout [K_dup (H*P) | V (H*P)],
    # so in-kernel slices are 128-aligned and the cos|sin table multiplies
    # elementwise (no lane-axis concat in the kernel).
    head_base = (jnp.arange(H) * d_head)[:, None]                     # (H, 1)
    k_cols = (head_base + (jnp.arange(P) % khalf)[None, :]).reshape(-1)
    v_cols = (head_base + khalf + jnp.arange(P)[None, :]).reshape(-1)
    col_idx = jnp.concatenate([k_cols, v_cols])                       # (2*HP,)
    W_perm = W[:, col_idx].astype(jnp.bfloat16)                       # (C, 2*HP)
    b_perm = b[col_idx].reshape(1, 2 * HP).astype(jnp.float32)

    # Fused cos|sin table matching the duplicated-k lane layout (n, h*P + p):
    # first half of each head block gets cos, second half gets sin.  Passed
    # untiled (N, HP); the kernel broadcasts it over the batch tile.
    pos = (N - jnp.arange(N, dtype=jnp.float32))[:, None]             # (N, 1)
    theta2 = theta.reshape(H, khalf)
    theta_dup = jnp.concatenate([theta2, theta2], axis=1).reshape(1, HP)
    ang = pos * theta_dup                                             # (N, HP)
    is_cos = (jnp.arange(HP) % P) < khalf
    trig = jnp.where(is_cos[None, :], jnp.cos(ang), jnp.sin(ang)).astype(jnp.float32)

    # Precomputed block-diagonal head selector (replaces in-kernel iota/where).
    head_id = jnp.arange(HP) // P
    mask = (head_id[:, None] == head_id[None, :]).astype(jnp.float32)  # (HP, HP)

    token2d = token.reshape(B * N, C).astype(jnp.bfloat16)
    # Target in kernel layout (B, P, H*P): tgt[b, i, h*P + j] = target[b, i*P+j, h]
    tgt3 = target.reshape(B, P, P, C).transpose(0, 1, 3, 2).reshape(B, P, HP)
    tgt3 = tgt3.astype(jnp.bfloat16)    # halves target DMA traffic / VMEM

    def _call(single_buffer_consts):
        # Constant-index operands need only a single VMEM buffer.
        const_kw = ({"pipeline_mode": pl.Buffered(1)}
                    if single_buffer_consts else {})
        grid_spec = pltpu.PrefetchScalarGridSpec(
            num_scalar_prefetch=0,
            grid=(nsteps,),
            in_specs=[
                pl.BlockSpec((TBN, C), lambda i: (i, 0)),
                pl.BlockSpec((C, 2 * HP), lambda i: (0, 0), **const_kw),
                pl.BlockSpec((1, 2 * HP), lambda i: (0, 0), **const_kw),
                pl.BlockSpec((N, HP), lambda i: (0, 0), **const_kw),
                pl.BlockSpec((HP, HP), lambda i: (0, 0), **const_kw),
                pl.BlockSpec((TB, P, HP), lambda i: (i, 0, 0)),
            ],
            out_specs=[
                pl.BlockSpec((TB, P, HP), lambda i: (i, 0, 0)),
                pl.BlockSpec((1, 8, 128), lambda i: (i, 0, 0)),
            ],
        )
        return pl.pallas_call(
            _update_net_kernel,
            out_shape=(
                jax.ShapeDtypeStruct((B, P, HP), jnp.float32),
                jax.ShapeDtypeStruct((nsteps, 8, 128), jnp.float32),
            ),
            grid_spec=grid_spec,
            compiler_params=pltpu.CompilerParams(
                # Per-step loss partials + disjoint output blocks -> the batch
                # axis is safe to run in parallel (2 TCs on v7x; no-op v5e/v6e).
                dimension_semantics=("parallel",),
                vmem_limit_bytes=32 * 1024 * 1024,
            ),
        )(token2d, W_perm, b_perm, trig, mask, tgt3)

    try:
        wm3, loss_tiles = _call(True)
    except Exception:
        # Fallback if this JAX build rejects single-buffered pipeline_mode.
        wm3, loss_tiles = _call(False)

    # Layout plumbing back to PyTorch's (B, P*P, C).
    weight_matrix = wm3.reshape(B, P, H, P).transpose(0, 1, 3, 2).reshape(B, P * P, H)
    loss = loss_tiles.sum() / (B * P * P * C)
    return weight_matrix, loss


def reference_forward(token, target, W, b, theta, num_h_patch):
    """Pure-JAX reference mirroring the PyTorch forward (cosine variant)."""
    B, N, C = token.shape
    P = num_h_patch
    with jax.default_matmul_precision("highest"):
        kv = token @ W + b                                    # (B, N, out_dim)
        d = W.shape[1] // C
        kv = kv.reshape(B, N, C, d).transpose(0, 2, 1, 3)     # b h n d
        k, v = kv[..., :d - P], kv[..., d - P:]
        k = jax.nn.silu(k)
        index = (N - jnp.arange(N, dtype=jnp.float32)).reshape(-1, 1)
        th = theta * index                                    # (C, N, P//2)
        k = jnp.concatenate([k * jnp.cos(th), k * jnp.sin(th)], axis=-1)
        wm = jnp.einsum('bhnd,bhne->bdeh', k, v)              # (B, P, P, C)
        wm = wm.reshape(B, P * P, C)
        loss = jnp.mean(jnp.abs(target - wm))
    return wm, loss


if __name__ == "__main__":
    # cfg: embed_dim=8, num_h_patch=16, base=10000, bias=True, type='cosine'
    B, N = 2, 8
    embed_dim = 8
    num_h_patch = 16
    base = 10000.0
    khalf = num_h_patch // 2
    out_dim = embed_dim * (khalf + num_h_patch)           # cosine: C * 1.5 * P
    d_param = out_dim - embed_dim * num_h_patch           # = C * P / 2

    key = jax.random.PRNGKey(0)
    k1, k2, k3, k4 = jax.random.split(key, 4)
    W = 0.02 * jax.random.normal(k1, (embed_dim, out_dim), jnp.float32)
    b = 0.01 * jax.random.normal(k2, (out_dim,), jnp.float32)
    theta = (base ** (-2.0 / d_param *
                      jnp.arange(d_param, dtype=jnp.float32))
             ).reshape(embed_dim, 1, khalf)

    token = jax.random.normal(k3, (B, N, embed_dim), jnp.float32)
    target = jax.random.normal(
        k4, (B, num_h_patch * num_h_patch, embed_dim), jnp.float32)

    wm, loss = update_net_forward(token, target, W, b, theta, num_h_patch)
    jax.block_until_ready((wm, loss))

    wm_ref, loss_ref_v = reference_forward(token, target, W, b, theta, num_h_patch)
    assert wm.shape == (B, num_h_patch * num_h_patch, embed_dim)
    # Tolerances reflect bf16 MXU inputs / bf16-streamed target vs f32 reference.
    assert jnp.allclose(wm, wm_ref, rtol=2e-2, atol=5e-3), "weight_matrix mismatch"
    assert jnp.allclose(loss, loss_ref_v, rtol=1e-2, atol=1e-3), "loss mismatch"
    print("KERNEL_OK")
</pallas_src>

<mosaic_0001>
module attributes {stable_mosaic.version = 11 : i64} {
  func.func @_update_net_kernel(%arg0: i32, %arg1: memref<8x8xbf16, #tpu.memory_space<vmem>>, %arg2: memref<8x256xbf16, #tpu.memory_space<vmem>>, %arg3: memref<1x256xf32, #tpu.memory_space<vmem>>, %arg4: memref<8x128xf32, #tpu.memory_space<vmem>>, %arg5: memref<128x128xf32, #tpu.memory_space<vmem>>, %arg6: memref<1x16x128xbf16, #tpu.memory_space<vmem>>, %arg7: memref<1x16x128xf32, #tpu.memory_space<vmem>>, %arg8: memref<1x8x128xf32, #tpu.memory_space<vmem>>) attributes {dimension_semantics = [#tpu.dimension_semantics<parallel>], iteration_bounds = array<i64: 2>, scalar_prefetch = 0 : i64, scratch_operands = 0 : i64, tpu.core_type = #tpu.core_type<tc>, window_params = [{transform_indices = @transform_0, window_bounds = array<i64: 8, 8>}, {pipeline_mode = #tpu.pipeline_mode<synchronous>, transform_indices = @transform_1, window_bounds = array<i64: 8, 256>}, {pipeline_mode = #tpu.pipeline_mode<synchronous>, transform_indices = @transform_2, window_bounds = array<i64: 1, 256>}, {pipeline_mode = #tpu.pipeline_mode<synchronous>, transform_indices = @transform_3, window_bounds = array<i64: 8, 128>}, {pipeline_mode = #tpu.pipeline_mode<synchronous>, transform_indices = @transform_4, window_bounds = array<i64: 128, 128>}, {transform_indices = @transform_5, window_bounds = array<i64: 1, 16, 128>}, {transform_indices = @transform_6, window_bounds = array<i64: 1, 16, 128>}, {transform_indices = @transform_7, window_bounds = array<i64: 1, 8, 128>}]} {
    %c0 = arith.constant 0 : index
    %c0_0 = arith.constant 0 : index
    %0 = vector.load %arg1[%c0, %c0_0] : memref<8x8xbf16, #tpu.memory_space<vmem>>, vector<8x8xbf16>
    %c0_1 = arith.constant 0 : index
    %c0_2 = arith.constant 0 : index
    %1 = vector.load %arg2[%c0_1, %c0_2] : memref<8x256xbf16, #tpu.memory_space<vmem>>, vector<8x256xbf16>
    %cst = arith.constant dense<0.000000e+00> : vector<8x256xf32>
    %2 = tpu.matmul %0, %1, %cst {dimension_numbers = #tpu.dot_dimension_numbers<[1], [0], [0], [1], [0, 0, 1, 1], [], []>} : vector<8x8xbf16>, vector<8x256xbf16>, vector<8x256xf32> -> vector<8x256xf32>
    %c0_3 = arith.constant 0 : index
    %c0_4 = arith.constant 0 : index
    %3 = vector.load %arg3[%c0_3, %c0_4] : memref<1x256xf32, #tpu.memory_space<vmem>>, vector<1x256xf32>
    %4 = vector.broadcast %3 : vector<1x256xf32> to vector<8x256xf32>
    %5 = arith.addf %2, %4 : vector<8x256xf32>
    %6 = vector.extract_strided_slice %5 {offsets = [0, 0], sizes = [8, 128], strides = [1, 1]} : vector<8x256xf32> to vector<8x128xf32>
    %7 = vector.shape_cast %6 : vector<8x128xf32> to vector<1x8x128xf32>
    %8 = vector.extract_strided_slice %5 {offsets = [0, 128], sizes = [8, 128], strides = [1, 1]} : vector<8x256xf32> to vector<8x128xf32>
    %9 = vector.shape_cast %8 : vector<8x128xf32> to vector<1x8x128xf32>
    %10 = arith.negf %7 : vector<1x8x128xf32>
    %11 = math.exp %10 : vector<1x8x128xf32>
    %cst_5 = arith.constant 1.000000e+00 : f32
    %12 = vector.broadcast %cst_5 : f32 to vector<1x8x128xf32>
    %13 = arith.addf %12, %11 : vector<1x8x128xf32>
    %14 = arith.divf %12, %13 : vector<1x8x128xf32>
    %15 = arith.mulf %7, %14 : vector<1x8x128xf32>
    %c0_6 = arith.constant 0 : index
    %c0_7 = arith.constant 0 : index
    %16 = vector.load %arg4[%c0_6, %c0_7] : memref<8x128xf32, #tpu.memory_space<vmem>>, vector<8x128xf32>
    %17 = vector.shape_cast %16 : vector<8x128xf32> to vector<1x8x128xf32>
    %18 = arith.mulf %15, %17 : vector<1x8x128xf32>
    %19 = arith.truncf %18 : vector<1x8x128xf32> to vector<1x8x128xbf16>
    %20 = arith.truncf %9 : vector<1x8x128xf32> to vector<1x8x128xbf16>
    "tpu.trace_start"() <{level = 10 : i32, message = "bnd,bne->bde"}> : () -> ()
    %cst_8 = arith.constant dense<0.000000e+00> : vector<1x128x128xf32>
    %21 = tpu.matmul %19, %20, %cst_8 {dimension_numbers = #tpu.dot_dimension_numbers<[1], [1], [2], [2], [0, 0, 0, 2, 1, 2], [0], [0]>} : vector<1x8x128xbf16>, vector<1x8x128xbf16>, vector<1x128x128xf32> -> vector<1x128x128xf32>
    "tpu.trace_stop"() : () -> ()
    %c0_9 = arith.constant 0 : index
    %c0_10 = arith.constant 0 : index
    %22 = vector.load %arg5[%c0_9, %c0_10] : memref<128x128xf32, #tpu.memory_space<vmem>>, vector<128x128xf32>
    %23 = vector.shape_cast %22 : vector<128x128xf32> to vector<1x128x128xf32>
    %24 = arith.mulf %21, %23 : vector<1x128x128xf32>
    %25 = vector.shape_cast %24 : vector<1x128x128xf32> to vector<1x8x16x128xf32>
    %cst_11 = arith.constant dense<0.000000e+00> : vector<1x16x128xf32>
    %26 = vector.multi_reduction <add>, %25, %cst_11 [1] : vector<1x8x16x128xf32> to vector<1x16x128xf32>
    %c0_12 = arith.constant 0 : index
    %c0_13 = arith.constant 0 : index
    %c0_14 = arith.constant 0 : index
    %27 = vector.load %arg7[%c0_12, %c0_13, %c0_14] : memref<1x16x128xf32, #tpu.memory_space<vmem>>, vector<1x16x128xf32>
    tpu.vector_store %arg7[%c0_12, %c0_13, %c0_14], %26 {strides = array<i32>} : memref<1x16x128xf32, #tpu.memory_space<vmem>>, vector<1x16x128xf32>,
    %c0_15 = arith.constant 0 : index
    %c0_16 = arith.constant 0 : index
    %c0_17 = arith.constant 0 : index
    %28 = vector.load %arg6[%c0_15, %c0_16, %c0_17] : memref<1x16x128xbf16, #tpu.memory_space<vmem>>, vector<1x16x128xbf16>
    %29 = arith.extf %28 : vector<1x16x128xbf16> to vector<1x16x128xf32>
    %30 = arith.subf %29, %26 : vector<1x16x128xf32>
    %31 = math.absf %30 : vector<1x16x128xf32>
    %32 = vector.shape_cast %31 : vector<1x16x128xf32> to vector<2x8x128xf32>
    %cst_18 = arith.constant dense<0.000000e+00> : vector<8x128xf32>
    %33 = vector.multi_reduction <add>, %32, %cst_18 [0] : vector<2x8x128xf32> to vector<8x128xf32>
    %c0_19 = arith.constant 0 : index
    %c0_20 = arith.constant 0 : index
    %c0_21 = arith.constant 0 : index
    %34 = vector.load %arg8[%c0_19, %c0_20, %c0_21] : memref<1x8x128xf32, #tpu.memory_space<vmem>>, vector<1x8x128xf32>
    %35 = vector.shape_cast %34 : vector<1x8x128xf32> to vector<8x128xf32>
    %36 = vector.shape_cast %33 : vector<8x128xf32> to vector<1x8x128xf32>
    tpu.vector_store %arg8[%c0_19, %c0_20, %c0_21], %36 {strides = array<i32>} : memref<1x8x128xf32, #tpu.memory_space<vmem>>, vector<1x8x128xf32>,
    return
  }
  func.func @transform_0(%arg0: i32) -> (i32, i32) {
    %c0_i32 = arith.constant 0 : i32
    %c0_i32_0 = arith.constant 0 : i32
    return %arg0, %c0_i32 : i32, i32
  }
  func.func @transform_1(%arg0: i32) -> (i32, i32) {
    %c0_i32 = arith.constant 0 : i32
    %c0_i32_0 = arith.constant 0 : i32
    %c0_i32_1 = arith.constant 0 : i32
    return %c0_i32, %c0_i32_0 : i32, i32
  }
  func.func @transform_2(%arg0: i32) -> (i32, i32) {
    %c0_i32 = arith.constant 0 : i32
    %c0_i32_0 = arith.constant 0 : i32
    %c0_i32_1 = arith.constant 0 : i32
    return %c0_i32, %c0_i32_0 : i32, i32
  }
  func.func @transform_3(%arg0: i32) -> (i32, i32) {
    %c0_i32 = arith.constant 0 : i32
    %c0_i32_0 = arith.constant 0 : i32
    %c0_i32_1 = arith.constant 0 : i32
    return %c0_i32, %c0_i32_0 : i32, i32
  }
  func.func @transform_4(%arg0: i32) -> (i32, i32) {
    %c0_i32 = arith.constant 0 : i32
    %c0_i32_0 = arith.constant 0 : i32
    %c0_i32_1 = arith.constant 0 : i32
    return %c0_i32, %c0_i32_0 : i32, i32
  }
  func.func @transform_5(%arg0: i32) -> (i32, i32, i32) {
    %c0_i32 = arith.constant 0 : i32
    %c0_i32_0 = arith.constant 0 : i32
    %c0_i32_1 = arith.constant 0 : i32
    return %arg0, %c0_i32, %c0_i32_0 : i32, i32, i32
  }
  func.func @transform_6(%arg0: i32) -> (i32, i32, i32) {
    %c0_i32 = arith.constant 0 : i32
    %c0_i32_0 = arith.constant 0 : i32
    %c0_i32_1 = arith.constant 0 : i32
    return %arg0, %c0_i32, %c0_i32_0 : i32, i32, i32
  }
  func.func @transform_7(%arg0: i32) -> (i32, i32, i32) {
    %c0_i32 = arith.constant 0 : i32
    %c0_i32_0 = arith.constant 0 : i32
    %c0_i32_1 = arith.constant 0 : i32
    return %arg0, %c0_i32, %c0_i32_0 : i32, i32, i32
  }
}

module attributes {stable_mosaic.version = 11 : i64} {
  func.func @_update_net_kernel(%arg0: i32, %arg1: memref<8x8xbf16, #tpu.memory_space<vmem>>, %arg2: memref<8x256xbf16, #tpu.memory_space<vmem>>, %arg3: memref<1x256xf32, #tpu.memory_space<vmem>>, %arg4: memref<8x128xf32, #tpu.memory_space<vmem>>, %arg5: memref<128x128xf32, #tpu.memory_space<vmem>>, %arg6: memref<1x16x128xbf16, #tpu.memory_space<vmem>>, %arg7: memref<1x16x128xf32, #tpu.memory_space<vmem>>, %arg8: memref<1x8x128xf32, #tpu.memory_space<vmem>>) attributes {dimension_semantics = [#tpu.dimension_semantics<parallel>], iteration_bounds = array<i64: 2>, scalar_prefetch = 0 : i64, scratch_operands = 0 : i64, tpu.core_type = #tpu.core_type<tc>, window_params = [{transform_indices = @transform_0, window_bounds = array<i64: 8, 8>}, {pipeline_mode = #tpu.pipeline_mode<synchronous>, transform_indices = @transform_1, window_bounds = array<i64: 8, 256>}, {pipeline_mode = #tpu.pipeline_mode<synchronous>, transform_indices = @transform_2, window_bounds = array<i64: 1, 256>}, {pipeline_mode = #tpu.pipeline_mode<synchronous>, transform_indices = @transform_3, window_bounds = array<i64: 8, 128>}, {pipeline_mode = #tpu.pipeline_mode<synchronous>, transform_indices = @transform_4, window_bounds = array<i64: 128, 128>}, {transform_indices = @transform_5, window_bounds = array<i64: 1, 16, 128>}, {transform_indices = @transform_6, window_bounds = array<i64: 1, 16, 128>}, {transform_indices = @transform_7, window_bounds = array<i64: 1, 8, 128>}]} {
    %c0 = arith.constant 0 : index
    %c0_0 = arith.constant 0 : index
    %0 = vector.load %arg1[%c0, %c0_0] : memref<8x8xbf16, #tpu.memory_space<vmem>>, vector<8x8xbf16>
    %c0_1 = arith.constant 0 : index
    %c0_2 = arith.constant 0 : index
    %1 = vector.load %arg2[%c0_1, %c0_2] : memref<8x256xbf16, #tpu.memory_space<vmem>>, vector<8x256xbf16>
    %cst = arith.constant dense<0.000000e+00> : vector<8x256xf32>
    %2 = tpu.matmul %0, %1, %cst {dimension_numbers = #tpu.dot_dimension_numbers<[1], [0], [0], [1], [0, 0, 1, 1], [], []>} : vector<8x8xbf16>, vector<8x256xbf16>, vector<8x256xf32> -> vector<8x256xf32>
    %c0_3 = arith.constant 0 : index
    %c0_4 = arith.constant 0 : index
    %3 = vector.load %arg3[%c0_3, %c0_4] : memref<1x256xf32, #tpu.memory_space<vmem>>, vector<1x256xf32>
    %4 = vector.broadcast %3 : vector<1x256xf32> to vector<8x256xf32>
    %5 = arith.addf %2, %4 : vector<8x256xf32>
    %6 = vector.extract_strided_slice %5 {offsets = [0, 0], sizes = [8, 128], strides = [1, 1]} : vector<8x256xf32> to vector<8x128xf32>
    %7 = vector.shape_cast %6 : vector<8x128xf32> to vector<1x8x128xf32>
    %8 = vector.extract_strided_slice %5 {offsets = [0, 128], sizes = [8, 128], strides = [1, 1]} : vector<8x256xf32> to vector<8x128xf32>
    %9 = vector.shape_cast %8 : vector<8x128xf32> to vector<1x8x128xf32>
    %10 = arith.negf %7 : vector<1x8x128xf32>
    %11 = math.exp %10 : vector<1x8x128xf32>
    %cst_5 = arith.constant 1.000000e+00 : f32
    %12 = vector.broadcast %cst_5 : f32 to vector<1x8x128xf32>
    %13 = arith.addf %12, %11 : vector<1x8x128xf32>
    %14 = arith.divf %12, %13 : vector<1x8x128xf32>
    %15 = arith.mulf %7, %14 : vector<1x8x128xf32>
    %c0_6 = arith.constant 0 : index
    %c0_7 = arith.constant 0 : index
    %16 = vector.load %arg4[%c0_6, %c0_7] : memref<8x128xf32, #tpu.memory_space<vmem>>, vector<8x128xf32>
    %17 = vector.shape_cast %16 : vector<8x128xf32> to vector<1x8x128xf32>
    %18 = arith.mulf %15, %17 : vector<1x8x128xf32>
    %19 = arith.truncf %18 : vector<1x8x128xf32> to vector<1x8x128xbf16>
    %20 = arith.truncf %9 : vector<1x8x128xf32> to vector<1x8x128xbf16>
    "tpu.trace_start"() <{level = 10 : i32, message = "bnd,bne->bde"}> : () -> ()
    %cst_8 = arith.constant dense<0.000000e+00> : vector<1x128x128xf32>
    %21 = tpu.matmul %19, %20, %cst_8 {dimension_numbers = #tpu.dot_dimension_numbers<[1], [1], [2], [2], [0, 0, 0, 2, 1, 2], [0], [0]>} : vector<1x8x128xbf16>, vector<1x8x128xbf16>, vector<1x128x128xf32> -> vector<1x128x128xf32>
    "tpu.trace_stop"() : () -> ()
    %c0_9 = arith.constant 0 : index
    %c0_10 = arith.constant 0 : index
    %22 = vector.load %arg5[%c0_9, %c0_10] : memref<128x128xf32, #tpu.memory_space<vmem>>, vector<128x128xf32>
    %23 = vector.shape_cast %22 : vector<128x128xf32> to vector<1x128x128xf32>
    %24 = arith.mulf %21, %23 : vector<1x128x128xf32>
    %25 = vector.shape_cast %24 : vector<1x128x128xf32> to vector<1x8x16x128xf32>
    %cst_11 = arith.constant dense<0.000000e+00> : vector<1x16x128xf32>
    %26 = vector.multi_reduction <add>, %25, %cst_11 [1] : vector<1x8x16x128xf32> to vector<1x16x128xf32>
    %c0_12 = arith.constant 0 : index
    %c0_13 = arith.constant 0 : index
    %c0_14 = arith.constant 0 : index
    %27 = vector.load %arg7[%c0_12, %c0_13, %c0_14] : memref<1x16x128xf32, #tpu.memory_space<vmem>>, vector<1x16x128xf32>
    tpu.vector_store %arg7[%c0_12, %c0_13, %c0_14], %26 {strides = array<i32>} : memref<1x16x128xf32, #tpu.memory_space<vmem>>, vector<1x16x128xf32>,
    %c0_15 = arith.constant 0 : index
    %c0_16 = arith.constant 0 : index
    %c0_17 = arith.constant 0 : index
    %28 = vector.load %arg6[%c0_15, %c0_16, %c0_17] : memref<1x16x128xbf16, #tpu.memory_space<vmem>>, vector<1x16x128xbf16>
    %29 = arith.extf %28 : vector<1x16x128xbf16> to vector<1x16x128xf32>
    %30 = arith.subf %29, %26 : vector<1x16x128xf32>
    %31 = math.absf %30 : vector<1x16x128xf32>
    %32 = vector.shape_cast %31 : vector<1x16x128xf32> to vector<2x8x128xf32>
    %cst_18 = arith.constant dense<0.000000e+00> : vector<8x128xf32>
    %33 = vector.multi_reduction <add>, %32, %cst_18 [0] : vector<2x8x128xf32> to vector<8x128xf32>
    %c0_19 = arith.constant 0 : index
    %c0_20 = arith.constant 0 : index
    %c0_21 = arith.constant 0 : index
    %34 = vector.load %arg8[%c0_19, %c0_20, %c0_21] : memref<1x8x128xf32, #tpu.memory_space<vmem>>, vector<1x8x128xf32>
    %35 = vector.shape_cast %34 : vector<1x8x128xf32> to vector<8x128xf32>
    %36 = vector.shape_cast %33 : vector<8x128xf32> to vector<1x8x128xf32>
    tpu.vector_store %arg8[%c0_19, %c0_20, %c0_21], %36 {strides = array<i32>} : memref<1x8x128xf32, #tpu.memory_space<vmem>>, vector<1x8x128xf32>,
    return
  }
  func.func @transform_0(%arg0: i32) -> (i32, i32) {
    %c0_i32 = arith.constant 0 : i32
    %c0_i32_0 = arith.constant 0 : i32
    return %arg0, %c0_i32 : i32, i32
  }
  func.func @transform_1(%arg0: i32) -> (i32, i32) {
    %c0_i32 = arith.constant 0 : i32
    %c0_i32_0 = arith.constant 0 : i32
    %c0_i32_1 = arith.constant 0 : i32
    return %c0_i32, %c0_i32_0 : i32, i32
  }
  func.func @transform_2(%arg0: i32) -> (i32, i32) {
    %c0_i32 = arith.constant 0 : i32
    %c0_i32_0 = arith.constant 0 : i32
    %c0_i32_1 = arith.constant 0 : i32
    return %c0_i32, %c0_i32_0 : i32, i32
  }
  func.func @transform_3(%arg0: i32) -> (i32, i32) {
    %c0_i32 = arith.constant 0 : i32
    %c0_i32_0 = arith.constant 0 : i32
    %c0_i32_1 = arith.constant 0 : i32
    return %c0_i32, %c0_i32_0 : i32, i32
  }
  func.func @transform_4(%arg0: i32) -> (i32, i32) {
    %c0_i32 = arith.constant 0 : i32
    %c0_i32_0 = arith.constant 0 : i32
    %c0_i32_1 = arith.constant 0 : i32
    return %c0_i32, %c0_i32_0 : i32, i32
  }
  func.func @transform_5(%arg0: i32) -> (i32, i32, i32) {
    %c0_i32 = arith.constant 0 : i32
    %c0_i32_0 = arith.constant 0 : i32
    %c0_i32_1 = arith.constant 0 : i32
    return %arg0, %c0_i32, %c0_i32_0 : i32, i32, i32
  }
  func.func @transform_6(%arg0: i32) -> (i32, i32, i32) {
    %c0_i32 = arith.constant 0 : i32
    %c0_i32_0 = arith.constant 0 : i32
    %c0_i32_1 = arith.constant 0 : i32
    return %arg0, %c0_i32, %c0_i32_0 : i32, i32, i32
  }
  func.func @transform_7(%arg0: i32) -> (i32, i32, i32) {
    %c0_i32 = arith.constant 0 : i32
    %c0_i32_0 = arith.constant 0 : i32
    %c0_i32_1 = arith.constant 0 : i32
    return %arg0, %c0_i32, %c0_i32_0 : i32, i32, i32
  }
}

</mosaic_0001>

<llo_original>
// kernel: tpu_custom_call.1
$region0: #{tpu_custom_call.1}
  #allocation0 [shape = 'u32[]', space=smem, size = 0x4, offset = 0x4, fixed_abs, tag = 'smem constant byte address 0x4 - core index']
  #allocation1 [shape = 'u32[144,128]{1,0:T(1,128)}', space=vmem, size = 0x12000, scoped, tag = 'internal scratch']
  %s0 = inlined_call_operand.vmem [shape: bf16[16,8], index: 0, kind: input, shape index: {}]
  %s1 = inlined_call_operand.hbm [shape: bf16[8,256], index: 1, kind: input, shape index: {}]
  %s2 = inlined_call_operand.vmem [shape: f32[1,256], index: 2, kind: input, shape index: {}]
  %s3 = inlined_call_operand.hbm [shape: f32[8,128], index: 3, kind: input, shape index: {}]
  %s4 = inlined_call_operand.hbm [shape: f32[128,128], index: 4, kind: input, shape index: {}]
  %s5 = inlined_call_operand.vmem [shape: bf16[2,16,128], index: 5, kind: input, shape index: {}]
  %s6 = inlined_call_operand.hbm [shape: f32[2,16,128], index: 6, kind: output, shape index: {0}]
  %s7 = inlined_call_operand.hbm [shape: f32[2,8,128], index: 7, kind: output, shape index: {1}]
  %8 = xla_tuple %s6, %s7
  %s9 = sld [smem:[#allocation0]]
  $region77: #{tpu_custom_call.1} parent=0
    _
  %s11 = ssub.s32 1, %s9
  %s12 = scalar_select 0, %s11, %s9
  $region1: #{tpu_custom_call.1} parent=0
    #allocation2 [shape = 'u8[4096]{0}', space=vmem, size = 0x1000, scoped, tag = 'input window, operand 1, single buffered']
    #allocation3 [shape = 's32[2]{0}', space=sflag, size = 0x8, scoped, tag = 'scoped memory for tpu_custom_call.1']
    #allocation4 [shape = 's32[2]{0}', space=sflag, size = 0x8, scoped, tag = 'scoped memory for tpu_custom_call.1']
    #allocation5 [shape = 'u8[4096]{0}', space=vmem, size = 0x1000, scoped, tag = 'input window, operand 3, single buffered']
    #allocation6 [shape = 's32[1]{0}', space=sflag, size = 0x4, scoped, tag = 'scoped memory for tpu_custom_call.1']
    #allocation7 [shape = 'u8[65536]{0}', space=vmem, size = 0x10000, scoped, tag = 'input window, operand 4, single buffered']
    #allocation8 [shape = 'u8[16384]{0}', space=vmem, size = 0x4000, scoped, tag = 'output window, operand 0']
    #allocation9 [shape = 'u8[8192]{0}', space=vmem, size = 0x2000, scoped, tag = 'output window, operand 1']
    #allocation10 [shape = 's32[2]{0}', space=sflag, size = 0x8, scoped, tag = 'scoped memory for tpu_custom_call.1']
    %13 = vsyncpa [#allocation3], 0
    %14 = vsyncpa [#allocation6], 0
    %15 = vsyncpa [#allocation4], 0
    %s16 = scalar_lea.sflag [#allocation4], 1
    %17 = vsyncpa %s16, 0
    %18 = vsyncpa [#allocation10], 0
    %s19 = scalar_lea.sflag [#allocation10], 1
    %20 = vsyncpa %s19, 0
    loop: start=0, step=1, limit=4
    $region2: #{tpu_custom_call.1} parent=1 // loop_pre_header
      _
    $region3: #{tpu_custom_call.1} parent=1 // loop_header
      %s22 = sphi 0, %s26
      %p23 = scmp.ge.s32.totalorder %s22, 4
      %s32 = sphi 0, %s34
      %s35 = sphi 0, %s32
      %s36 = sphi 0, %s35
      %s52 = sphi 0, %s36
      %s56 = sphi 0, %s56
      %s58 = sphi 0, %s56
      %s59 = sphi 0, %s58
      %s73 = sphi 0, %s59
      %s77 = sphi 0, %s77
      %s79 = sphi 0, %s77
      %s80 = sphi 0, %s79
      %s94 = sphi 0, %s80
      %s98 = sphi 0, %s98
      %s100 = sphi 0, %s98
      %s101 = sphi 0, %s100
      %s115 = sphi 0, %s101
      %s119 = sphi 0, %s119
      %s121 = sphi 0, %s119
      %s122 = sphi 0, %s121
      %s136 = sphi 0, %s122
      %s142 = sphi 0, %s144
      %s145 = sphi 0, %s142
      %s146 = sphi 0, %s145
      %s162 = sphi 0, %s146
      %s168 = sphi 0, %s170
      %s171 = sphi 0, %s168
      %s172 = sphi 0, %s171
      %s188 = sphi 0, %s172
      %s194 = sphi 0, %s196
      %s197 = sphi 0, %s194
      %s198 = sphi 0, %s197
      %s214 = sphi 0, %s198
    $region4: #{tpu_custom_call.1} parent=1 // loop_header_branch
      %25 = sbr.rel (%p23) target = $region8
    $region5: #{tpu_custom_call.1} parent=1 // loop_body
      %s27 = ssub.s32 %s22, 1
      %s28 = ssub.s32 %s22, 2
      %s29 = sadd.s32 %s22, 1
      %s30 = ssub.s32 %s22, %s29
      %p31 = scmp.eq.s32.totalorder %s30, 0
      %s33 = sadd.s32 %s32, 1
      %s34 = scalar_select %p31, %s32, %s33
      %p37 = pneg %p31
      %p38 = scmp.eq.s32.totalorder %s22, 1
      %p39 = por %p37, %p38
      %p40 = scmp.ne.s32.totalorder %s32, %s35
      %p41 = scmp.eq.s32.totalorder %s22, 0
      %p42 = por %p40, %p41
      %p43 = scmp.ne.s32.totalorder %s32, %s35
      %p44 = scmp.eq.s32.totalorder %s27, 1
      %p45 = por %p43, %p44
      %p46 = scmp.ne.s32.totalorder %s35, %s36
      %p47 = scmp.eq.s32.totalorder %s27, 0
      %p48 = por %p46, %p47
      %p49 = scmp.ne.s32.totalorder %s35, %s36
      %p50 = scmp.eq.s32.totalorder %s28, 1
      %p51 = por %p49, %p50
      %p53 = scmp.ne.s32.totalorder %s36, %s52
      %p54 = scmp.eq.s32.totalorder %s28, 0
      %p55 = por %p53, %p54
      %s57 = sadd.s32 %s56, 1
      %p60 = scmp.eq.s32.totalorder %s22, 1
      %p61 = scmp.ne.s32.totalorder %s56, %s58
      %p62 = scmp.eq.s32.totalorder %s22, 0
      %p63 = por %p61, %p62
      %p64 = scmp.ne.s32.totalorder %s56, %s58
      %p65 = scmp.eq.s32.totalorder %s27, 1
      %p66 = por %p64, %p65
      %p67 = scmp.ne.s32.totalorder %s58, %s59
      %p68 = scmp.eq.s32.totalorder %s27, 0
      %p69 = por %p67, %p68
      %p70 = scmp.ne.s32.totalorder %s58, %s59
      %p71 = scmp.eq.s32.totalorder %s28, 1
      %p72 = por %p70, %p71
      %p74 = scmp.ne.s32.totalorder %s59, %s73
      %p75 = scmp.eq.s32.totalorder %s28, 0
      %p76 = por %p74, %p75
      %s78 = sadd.s32 %s77, 1
      %p81 = scmp.eq.s32.totalorder %s22, 1
      %p82 = scmp.ne.s32.totalorder %s77, %s79
      %p83 = scmp.eq.s32.totalorder %s22, 0
      %p84 = por %p82, %p83
      %p85 = scmp.ne.s32.totalorder %s77, %s79
      %p86 = scmp.eq.s32.totalorder %s27, 1
      %p87 = por %p85, %p86
      %p88 = scmp.ne.s32.totalorder %s79, %s80
      %p89 = scmp.eq.s32.totalorder %s27, 0
      %p90 = por %p88, %p89
      %p91 = scmp.ne.s32.totalorder %s79, %s80
      %p92 = scmp.eq.s32.totalorder %s28, 1
      %p93 = por %p91, %p92
      %p95 = scmp.ne.s32.totalorder %s80, %s94
      %p96 = scmp.eq.s32.totalorder %s28, 0
      %p97 = por %p95, %p96
      %s99 = sadd.s32 %s98, 1
      %p102 = scmp.eq.s32.totalorder %s22, 1
      %p103 = scmp.ne.s32.totalorder %s98, %s100
      %p104 = scmp.eq.s32.totalorder %s22, 0
      %p105 = por %p103, %p104
      %p106 = scmp.ne.s32.totalorder %s98, %s100
      %p107 = scmp.eq.s32.totalorder %s27, 1
      %p108 = por %p106, %p107
      %p109 = scmp.ne.s32.totalorder %s100, %s101
      %p110 = scmp.eq.s32.totalorder %s27, 0
      %p111 = por %p109, %p110
      %p112 = scmp.ne.s32.totalorder %s100, %s101
      %p113 = scmp.eq.s32.totalorder %s28, 1
      %p114 = por %p112, %p113
      %p116 = scmp.ne.s32.totalorder %s101, %s115
      %p117 = scmp.eq.s32.totalorder %s28, 0
      %p118 = por %p116, %p117
      %s120 = sadd.s32 %s119, 1
      %p123 = scmp.eq.s32.totalorder %s22, 1
      %p124 = scmp.ne.s32.totalorder %s119, %s121
      %p125 = scmp.eq.s32.totalorder %s22, 0
      %p126 = por %p124, %p125
      %p127 = scmp.ne.s32.totalorder %s119, %s121
      %p128 = scmp.eq.s32.totalorder %s27, 1
      %p129 = por %p127, %p128
      %p130 = scmp.ne.s32.totalorder %s121, %s122
      %p131 = scmp.eq.s32.totalorder %s27, 0
      %p132 = por %p130, %p131
      %p133 = scmp.ne.s32.totalorder %s121, %s122
      %p134 = scmp.eq.s32.totalorder %s28, 1
      %p135 = por %p133, %p134
      %p137 = scmp.ne.s32.totalorder %s122, %s136
      %p138 = scmp.eq.s32.totalorder %s28, 0
      %p139 = por %p137, %p138
      %s140 = ssub.s32 %s22, %s29
      %p141 = scmp.eq.s32.totalorder %s140, 0
      %s143 = sadd.s32 %s142, 1
      %s144 = scalar_select %p141, %s142, %s143
      %p147 = pneg %p141
      %p148 = scmp.eq.s32.totalorder %s22, 1
      %p149 = por %p147, %p148
      %p150 = scmp.ne.s32.totalorder %s142, %s145
      %p151 = scmp.eq.s32.totalorder %s22, 0
      %p152 = por %p150, %p151
      %p153 = scmp.ne.s32.totalorder %s142, %s145
      %p154 = scmp.eq.s32.totalorder %s27, 1
      %p155 = por %p153, %p154
      %p156 = scmp.ne.s32.totalorder %s145, %s146
      %p157 = scmp.eq.s32.totalorder %s27, 0
      %p158 = por %p156, %p157
      %p159 = scmp.ne.s32.totalorder %s145, %s146
      %p160 = scmp.eq.s32.totalorder %s28, 1
      %p161 = por %p159, %p160
      %p163 = scmp.ne.s32.totalorder %s146, %s162
      %p164 = scmp.eq.s32.totalorder %s28, 0
      %p165 = por %p163, %p164
      %s166 = ssub.s32 %s22, %s29
      %p167 = scmp.eq.s32.totalorder %s166, 0
      %s169 = sadd.s32 %s168, 1
      %s170 = scalar_select %p167, %s168, %s169
      %p173 = pneg %p167
      %p174 = scmp.eq.s32.totalorder %s22, 1
      %p175 = por %p173, %p174
      %p176 = scmp.ne.s32.totalorder %s168, %s171
      %p177 = scmp.eq.s32.totalorder %s22, 0
      %p178 = por %p176, %p177
      %p179 = scmp.ne.s32.totalorder %s168, %s171
      %p180 = scmp.eq.s32.totalorder %s27, 1
      %p181 = por %p179, %p180
      %p182 = scmp.ne.s32.totalorder %s171, %s172
      %p183 = scmp.eq.s32.totalorder %s27, 0
      %p184 = por %p182, %p183
      %p185 = scmp.ne.s32.totalorder %s171, %s172
      %p186 = scmp.eq.s32.totalorder %s28, 1
      %p187 = por %p185, %p186
      %p189 = scmp.ne.s32.totalorder %s172, %s188
      %p190 = scmp.eq.s32.totalorder %s28, 0
      %p191 = por %p189, %p190
      %s192 = ssub.s32 %s22, %s29
      %p193 = scmp.eq.s32.totalorder %s192, 0
      %s195 = sadd.s32 %s194, 1
      %s196 = scalar_select %p193, %s194, %s195
      %p199 = pneg %p193
      %p200 = scmp.eq.s32.totalorder %s22, 1
      %p201 = por %p199, %p200
      %p202 = scmp.ne.s32.totalorder %s194, %s197
      %p203 = scmp.eq.s32.totalorder %s22, 0
      %p204 = por %p202, %p203
      %p205 = scmp.ne.s32.totalorder %s194, %s197
      %p206 = scmp.eq.s32.totalorder %s27, 1
      %p207 = por %p205, %p206
      %p208 = scmp.ne.s32.totalorder %s197, %s198
      %p209 = scmp.eq.s32.totalorder %s27, 0
      %p210 = por %p208, %p209
      %p211 = scmp.ne.s32.totalorder %s197, %s198
      %p212 = scmp.eq.s32.totalorder %s28, 1
      %p213 = por %p211, %p212
      %p215 = scmp.ne.s32.totalorder %s198, %s214
      %p216 = scmp.eq.s32.totalorder %s28, 0
      %p217 = por %p215, %p216
      %p218 = scmp.le.s32.totalorder 1, %s22
      %p219 = scmp.lt.s32.totalorder %s22, 3
      %p220 = pnand %p218, %p219
      %p221 = pneg %p220
      // Predicated region
      $region9: #{tpu_custom_call.1} parent=5 // pred_check
        _
      $region10: #{tpu_custom_call.1} parent=5 // pred_check_branch
        %223 = sbr.rel (%p220) target = $region12
      $region11: #{tpu_custom_call.1} parent=5 // pred_region
        %s224 = ssub.s32 %s22, 1
        // Predicated region
        $region13: #{tpu_custom_call.1} parent=11 // pred_check
          %p225 = pneg %p69
        $region14: #{tpu_custom_call.1} parent=11 // pred_check_branch
          %227 = sbr.rel (%p225) target = $region16
        $region15: #{tpu_custom_call.1} parent=11 // pred_region
          %s229 = ssub.s32 128, 128
          %230 = vsyncadd [#allocation3], %s229
          %s232 = sshll.u32 [#allocation2], 4
          %s233 = int_to_ptr.vmem [resolvable:$true] %s232
          %235 = dma.hbm_to_vmem [thread:$0]  %s1, 128, %s233, [#allocation3]
        $region16: #{tpu_custom_call.1} parent=11 // pred_fallthru
          _
        // Predicated region
        $region17: #{tpu_custom_call.1} parent=11 // pred_check
          %p236 = pneg %p90
        $region18: #{tpu_custom_call.1} parent=11 // pred_check_branch
          %238 = sbr.rel (%p236) target = $region20
        $region19: #{tpu_custom_call.1} parent=11 // pred_region
          _
        $region20: #{tpu_custom_call.1} parent=11 // pred_fallthru
          _
        // Predicated region
        $region21: #{tpu_custom_call.1} parent=11 // pred_check
          %p239 = pneg %p111
        $region22: #{tpu_custom_call.1} parent=11 // pred_check_branch
          %241 = sbr.rel (%p239) target = $region24
        $region23: #{tpu_custom_call.1} parent=11 // pred_region
          %s243 = ssub.s32 128, 128
          %244 = vsyncadd [#allocation6], %s243
          %s246 = sshll.u32 [#allocation5], 4
          %s247 = int_to_ptr.vmem [resolvable:$true] %s246
          %249 = dma.hbm_to_vmem [thread:$0]  %s3, 128, %s247, [#allocation6]
        $region24: #{tpu_custom_call.1} parent=11 // pred_fallthru
          _
        // Predicated region
        $region25: #{tpu_custom_call.1} parent=11 // pred_check
          %p250 = pneg %p132
        $region26: #{tpu_custom_call.1} parent=11 // pred_check_branch
          %252 = sbr.rel (%p250) target = $region28
        $region27: #{tpu_custom_call.1} parent=11 // pred_region
          %s254 = ssub.s32 2048, 2048
          %255 = vsyncadd [#allocation6], %s254
          %s256 = sshll.u32 [#allocation7], 4
          %s257 = int_to_ptr.vmem [resolvable:$true] %s256
          %262 = dma.hbm_to_vmem [thread:$0]  %s4, 2048, %s257, [#allocation6], 128, 128, 8
        $region28: #{tpu_custom_call.1} parent=11 // pred_fallthru
          _
      $region12: #{tpu_custom_call.1} parent=5 // pred_fallthru
        _
      %p263 = scmp.lt.s32.totalorder %s22, 2
      // Predicated region
      $region29: #{tpu_custom_call.1} parent=5 // pred_check
        %p264 = pneg %p263
      $region30: #{tpu_custom_call.1} parent=5 // pred_check_branch
        %266 = sbr.rel (%p264) target = $region32
      $region31: #{tpu_custom_call.1} parent=5 // pred_region
        // Predicated region
        $region33: #{tpu_custom_call.1} parent=31 // pred_check
          %p267 = pneg %p42
        $region34: #{tpu_custom_call.1} parent=31 // pred_check_branch
          %269 = sbr.rel (%p267) target = $region36
        $region35: #{tpu_custom_call.1} parent=31 // pred_region
          %p270 = scmp.lt.s32.totalorder %s22, 1
          %s271 = scalar_select %p270, %s22, 1
          %s272 = smul.addr %s271, 4
          %s273 = scalar_lea.vmem %s0, %s272
        $region36: #{tpu_custom_call.1} parent=31 // pred_fallthru
          _
        // Predicated region
        $region37: #{tpu_custom_call.1} parent=31 // pred_check
          %p274 = pneg %p152
        $region38: #{tpu_custom_call.1} parent=31 // pred_check_branch
          %276 = sbr.rel (%p274) target = $region40
        $region39: #{tpu_custom_call.1} parent=31 // pred_region
          %p277 = scmp.lt.s32.totalorder %s22, 1
          %s278 = scalar_select %p277, %s22, 1
          %s279 = smul.addr %s278, 2
          %s280 = smul.addr %s279, 4
          %s281 = scalar_lea.vmem %s5, %s280
        $region40: #{tpu_custom_call.1} parent=31 // pred_fallthru
          _
      $region32: #{tpu_custom_call.1} parent=5 // pred_fallthru
        _
      %p282 = scmp.le.s32.totalorder 1, %s22
      %p283 = scmp.lt.s32.totalorder %s22, 3
      %p284 = pnand %p282, %p283
      %p285 = pneg %p284
      // Predicated region
      $region41: #{tpu_custom_call.1} parent=5 // pred_check
        _
      $region42: #{tpu_custom_call.1} parent=5 // pred_check_branch
        %287 = sbr.rel (%p284) target = $region44
      $region43: #{tpu_custom_call.1} parent=5 // pred_region
        %s288 = ssub.s32 %s22, 1
        // Predicated region
        $region45: #{tpu_custom_call.1} parent=43 // pred_check
          %p289 = pneg %p69
        $region46: #{tpu_custom_call.1} parent=43 // pred_check_branch
          %291 = sbr.rel (%p289) target = $region48
        $region47: #{tpu_custom_call.1} parent=43 // pred_region
          %292 = dma.done [#allocation3], 128
        $region48: #{tpu_custom_call.1} parent=43 // pred_fallthru
          _
        // Predicated region
        $region49: #{tpu_custom_call.1} parent=43 // pred_check
          %p293 = pneg %p111
        $region50: #{tpu_custom_call.1} parent=43 // pred_check_branch
          %295 = sbr.rel (%p293) target = $region52
        $region51: #{tpu_custom_call.1} parent=43 // pred_region
          %296 = dma.done [#allocation6], 128
        $region52: #{tpu_custom_call.1} parent=43 // pred_fallthru
          _
        // Predicated region
        $region53: #{tpu_custom_call.1} parent=43 // pred_check
          %p297 = pneg %p132
        $region54: #{tpu_custom_call.1} parent=43 // pred_check_branch
          %299 = sbr.rel (%p297) target = $region56
        $region55: #{tpu_custom_call.1} parent=43 // pred_region
          %300 = dma.done [#allocation6], 2048
        $region56: #{tpu_custom_call.1} parent=43 // pred_fallthru
          _
        %p301 = scmp.lt.s32.totalorder %s27, 1
        %s302 = scalar_select %p301, %s27, 1
        %s303 = smul.addr %s302, 4
        %s304 = scalar_lea.vmem %s0, %s303
        %p305 = pneg %p48
        %p306 = pneg %p45
        %p307 = pneg %p69
        %p308 = pneg %p66
        %p309 = pneg %p90
        %p310 = pneg %p87
        %p311 = pneg %p111
        %p312 = pneg %p108
        %p313 = pneg %p132
        %p314 = pneg %p129
        %p315 = scmp.lt.s32.totalorder %s27, 1
        %s316 = scalar_select %p315, %s27, 1
        %s317 = smul.addr %s316, 2
        %s318 = smul.addr %s317, 4
        %s319 = scalar_lea.vmem %s5, %s318
        %p320 = pneg %p158
        %p321 = pneg %p155
        %p322 = pneg %p184
        %p323 = pneg %p181
        %s324 = sand.u32 %s171, 1
        %s325 = scalar_lea.sflag [#allocation4], %s324
        %s326 = sand.u32 %s171, 1
        %s327 = smul.addr %s326, 16
        %s328 = scalar_lea.vmem [#allocation8], %s327
        %p329 = pneg %p210
        %p330 = pneg %p207
        %s331 = sand.u32 %s197, 1
        %s332 = scalar_lea.sflag [#allocation10], %s331
        %s333 = sand.u32 %s197, 1
        %s334 = smul.addr %s333, 8
        %s335 = scalar_lea.vmem [#allocation9], %s334
        %p336 = scmp.lt.s32.totalorder %s27, 1
        %s337 = scalar_select %p336, %s27, 1
        %s338 = smul.addr %s337, 4
        %s339 = scalar_lea.vmem %s0, %s338
        %p340 = scmp.lt.s32.totalorder %s27, 1
        %s341 = scalar_select %p340, %s27, 1
        %s342 = smul.addr %s341, 2
        %s343 = smul.addr %s342, 4
        %s344 = scalar_lea.vmem %s5, %s343
        %v346 = vld [vmem:[%s339] sm:$0xf]
        %v347 = vld [vmem:[#allocation2] sm:$0xff]
        %v348 = vld [vmem:[%s2] sm:$0x3]
        %v350 = vlaneseq
        %v351 = vshrl.u32 %v350, 7
        %v352 = vsub.s32 0, %v351
        %v353 = vrot.slane %v348, %v352
        %v354 = vlaneseq
        %v355 = vshrl.u32 %v354, 7
        %v356 = vsub.s32 1, %v355
        %v357 = vrot.slane %v348, %v356
        %v361 = vunpack.c.l.b16 %v347
        %v362 = vunpack.c.h.b16 %v347
        %v363 = vpack.c.b16 %v361, %v361
        %v364 = vpack.c.b16 %v362, %v362
        %vm365 = vcmask 64512
        %v367 = vsel %vm365, %v346, 0
        %vm369 = vcmask 1043456
        %v371 = vsel %vm369, %v363, 0
        %v374 = vsel %vm369, %v364, 0
        %376 = vmatprep.subr.bf16.mxu0 0
        %377 = vmatpush1.bf16.msra.mxu0 0
        %378 = vmatprep.subr.bf16.mxu0 0
        %379 = vmatpush1.bf16.msra.mxu0 0
        %380 = vmatprep.subr.bf16.mxu0 0
        %381 = vmatpush1.bf16.msra.mxu0 0
        %382 = vmatprep.subr.bf16.mxu0 0
        %383 = vmatpush1.bf16.msra.mxu0 0
        %384 = vmatprep.subr.bf16.mxu0 0
        %385 = vmatpush1.bf16.msra.mxu0 0
        %386 = vmatprep.subr.bf16.mxu0 0
        %387 = vmatpush1.bf16.msra.mxu0 0
        %388 = vmatprep.subr.bf16.mxu0 0
        %389 = vmatpush1.bf16.msra.mxu0 0
        %390 = vmatprep.subr.bf16.mxu0 %v374
        %391 = vmatpush1.bf16.msra.mxu0 %v371
        %392 = vmatprep.subr.bf16.mxu0 0
        %393 = vmatpush2.bf16.msra.mxu0 0
        %394 = vmatprep.subr.bf16.mxu0 0
        %395 = vmatpush2.bf16.msra.mxu0 0
        %396 = vmatprep.subr.bf16.mxu0 0
        %397 = vmatpush2.bf16.msra.mxu0 0
        %398 = vmatprep.subr.bf16.mxu0 0
        %399 = vmatpush2.bf16.msra.mxu0 0
        %400 = vmatprep.subr.bf16.mxu0 0
        %401 = vmatpush2.bf16.msra.mxu0 0
        %402 = vmatprep.subr.bf16.mxu0 0
        %403 = vmatpush2.bf16.msra.mxu0 0
        %404 = vmatprep.subr.bf16.mxu0 0
        %405 = vmatpush2.bf16.msra.mxu0 0
        %406 = vmatprep.subr.bf16.mxu0 0
        %407 = vmatpush2.bf16.msra.mxu0 0
        %408 = vmatprep.mubr.bf16.mxu0 0
        %409 = vmatmul.mubr.bf16.gmra.mxu0 %v367
        %v410 = vpop.f32.mrf.mxu0
        %v411 = vadd.f32 %v353, %v410
        %v412 = vpop.f32.mrf.mxu0
        %v413 = vadd.f32 %v357, %v412
        %v414 = vpop.f32.mrf.mxu0
        %v415 = vpop.f32.mrf.mxu0
        %416 = vdwg.mxu0
        %v417 = vxor.u32 %v411, 2147483648
        %v418 = vmul.f32 %v417, 1.442695
        %v419 = vpow.pop %v418
        %v420 = vadd.f32 %v419, 1.0
        %v421 = vrcp.pop %v420
        %v422 = vmul.f32 1.0, %v421
        %v423 = vmul.f32 %v411, %v422
        %v424 = vld [vmem:[#allocation5] sm:$0xff]
        %v425 = vmul.f32 %v423, %v424
        %v426 = vpack.c.bf16 %v425, %v425
        %v427 = vpack.c.bf16 %v413, %v413
        %428 = vxpose.xlu0.c.b16.start [1/8] %v426, 128
        %429 = vxpose.xlu0.c.b16.cont [2/8] 0, 128
        %430 = vxpose.xlu0.c.b16.cont [3/8] 0, 128
        %431 = vxpose.xlu0.c.b16.cont [4/8] 0, 128
        %432 = vxpose.xlu0.c.b16.cont [5/8] 0, 128
        %433 = vxpose.xlu0.c.b16.cont [6/8] 0, 128
        %434 = vxpose.xlu0.c.b16.cont [7/8] 0, 128
        %435 = vxpose.xlu0.c.b16.end [8/8] 0, 128
        %v436 = vpop.trf.xlu0
        %v437 = vpop.trf.xlu0
        %v438 = vpop.trf.xlu0
        %v439 = vpop.trf.xlu0
        %v440 = vpop.trf.xlu0
        %v441 = vpop.trf.xlu0
        %v442 = vpop.trf.xlu0
        %v443 = vpop.trf.xlu0
        %v445 = vsel %vm365, %v436, 0
        %v448 = vsel %vm365, %v437, 0
        %v451 = vsel %vm365, %v438, 0
        %v454 = vsel %vm365, %v439, 0
        %v457 = vsel %vm365, %v440, 0
        %v460 = vsel %vm365, %v441, 0
        %v463 = vsel %vm365, %v442, 0
        %v466 = vsel %vm365, %v443, 0
        %v469 = vsel %vm369, %v427, 0
        %471 = vmatprep.subr.bf16.mxu0 0
        %472 = vmatpush1.bf16.msra.mxu0 0
        %473 = vmatprep.subr.bf16.mxu0 0
        %474 = vmatpush1.bf16.msra.mxu0 0
        %475 = vmatprep.subr.bf16.mxu0 0
        %476 = vmatpush1.bf16.msra.mxu0 0
        %477 = vmatprep.subr.bf16.mxu0 0
        %478 = vmatpush1.bf16.msra.mxu0 0
        %479 = vmatprep.subr.bf16.mxu0 0
        %480 = vmatpush1.bf16.msra.mxu0 0
        %481 = vmatprep.subr.bf16.mxu0 0
        %482 = vmatpush1.bf16.msra.mxu0 0
        %483 = vmatprep.subr.bf16.mxu0 0
        %484 = vmatpush1.bf16.msra.mxu0 0
        %485 = vmatprep.subr.bf16.mxu0 0
        %486 = vmatpush1.bf16.msra.mxu0 %v469
        %487 = vmatprep.subr.bf16.mxu0 0
        %488 = vmatpush2.bf16.msra.mxu0 0
        %489 = vmatprep.subr.bf16.mxu0 0
        %490 = vmatpush2.bf16.msra.mxu0 0
        %491 = vmatprep.subr.bf16.mxu0 0
        %492 = vmatpush2.bf16.msra.mxu0 0
        %493 = vmatprep.subr.bf16.mxu0 0
        %494 = vmatpush2.bf16.msra.mxu0 0
        %495 = vmatprep.subr.bf16.mxu0 0
        %496 = vmatpush2.bf16.msra.mxu0 0
        %497 = vmatprep.subr.bf16.mxu0 0
        %498 = vmatpush2.bf16.msra.mxu0 0
        %499 = vmatprep.subr.bf16.mxu0 0
        %500 = vmatpush2.bf16.msra.mxu0 0
        %501 = vmatprep.subr.bf16.mxu0 0
        %502 = vmatpush2.bf16.msra.mxu0 0
        %503 = vmatprep.mubr.bf16.mxu0 0
        %504 = vmatmul.mubr.bf16.gmra.mxu0 %v445
        %v505 = vpop.f32.mrf.mxu0
        %v506 = vadd.f32 0.0, %v505
        %v507 = vpop.f32.mrf.mxu0
        %v508 = vpop.f32.mrf.mxu0
        %v509 = vadd.f32 0.0, %v508
        %v510 = vpop.f32.mrf.mxu0
        %511 = vmatprep.mubr.bf16.mxu0 0
        %512 = vmatmul.mubr.bf16.gmra.mxu0 %v448
        %v513 = vpop.f32.mrf.mxu0
        %v514 = vadd.f32 0.0, %v513
        %v515 = vpop.f32.mrf.mxu0
        %v516 = vpop.f32.mrf.mxu0
        %v517 = vadd.f32 0.0, %v516
        %v518 = vpop.f32.mrf.mxu0
        %519 = vmatprep.mubr.bf16.mxu0 0
        %520 = vmatmul.mubr.bf16.gmra.mxu0 %v451
        %v521 = vpop.f32.mrf.mxu0
        %v522 = vadd.f32 0.0, %v521
        %v523 = vpop.f32.mrf.mxu0
        %v524 = vpop.f32.mrf.mxu0
        %v525 = vadd.f32 0.0, %v524
        %v526 = vpop.f32.mrf.mxu0
        %527 = vmatprep.mubr.bf16.mxu0 0
        %528 = vmatmul.mubr.bf16.gmra.mxu0 %v454
        %v529 = vpop.f32.mrf.mxu0
        %v530 = vadd.f32 0.0, %v529
        %v531 = vpop.f32.mrf.mxu0
        %v532 = vpop.f32.mrf.mxu0
        %v533 = vadd.f32 0.0, %v532
        %v534 = vpop.f32.mrf.mxu0
        %535 = vmatprep.mubr.bf16.mxu0 0
        %536 = vmatmul.mubr.bf16.gmra.mxu0 %v457
        %v537 = vpop.f32.mrf.mxu0
        %v538 = vadd.f32 0.0, %v537
        %v539 = vpop.f32.mrf.mxu0
        %v540 = vpop.f32.mrf.mxu0
        %v541 = vadd.f32 0.0, %v540
        %v542 = vpop.f32.mrf.mxu0
        %543 = vmatprep.mubr.bf16.mxu0 0
        %544 = vmatmul.mubr.bf16.gmra.mxu0 %v460
        %v545 = vpop.f32.mrf.mxu0
        %v546 = vadd.f32 0.0, %v545
        %v547 = vpop.f32.mrf.mxu0
        %v548 = vpop.f32.mrf.mxu0
        %v549 = vadd.f32 0.0, %v548
        %v550 = vpop.f32.mrf.mxu0
        %551 = vmatprep.mubr.bf16.mxu0 0
        %552 = vmatmul.mubr.bf16.gmra.mxu0 %v463
        %v553 = vpop.f32.mrf.mxu0
        %v554 = vadd.f32 0.0, %v553
        %v555 = vpop.f32.mrf.mxu0
        %v556 = vpop.f32.mrf.mxu0
        %v557 = vadd.f32 0.0, %v556
        %v558 = vpop.f32.mrf.mxu0
        %559 = vmatprep.mubr.bf16.mxu0 0
        %560 = vmatmul.mubr.bf16.gmra.mxu0 %v466
        %v561 = vpop.f32.mrf.mxu0
        %v562 = vadd.f32 0.0, %v561
        %v563 = vpop.f32.mrf.mxu0
        %v564 = vpop.f32.mrf.mxu0
        %v565 = vadd.f32 0.0, %v564
        %v566 = vpop.f32.mrf.mxu0
        %567 = vdwg.mxu0
        %v568 = vld [vmem:[#allocation7] sm:$0xff]
        %v569 = vld [vmem:[#allocation7 + $0x8] sm:$0xff]
        %v570 = vld [vmem:[#allocation7 + $0x10] sm:$0xff]
        %v571 = vld [vmem:[#allocation7 + $0x18] sm:$0xff]
        %v572 = vld [vmem:[#allocation7 + $0x20] sm:$0xff]
        %v573 = vld [vmem:[#allocation7 + $0x28] sm:$0xff]
        %v574 = vld [vmem:[#allocation7 + $0x30] sm:$0xff]
        %v575 = vld [vmem:[#allocation7 + $0x38] sm:$0xff]
        %v576 = vld [vmem:[#allocation7 + $0x40] sm:$0xff]
        %v577 = vld [vmem:[#allocation7 + $0x48] sm:$0xff]
        %v578 = vld [vmem:[#allocation7 + $0x50] sm:$0xff]
        %v579 = vld [vmem:[#allocation7 + $0x58] sm:$0xff]
        %v580 = vld [vmem:[#allocation7 + $0x60] sm:$0xff]
        %v581 = vld [vmem:[#allocation7 + $0x68] sm:$0xff]
        %v582 = vld [vmem:[#allocation7 + $0x70] sm:$0xff]
        %v583 = vld [vmem:[#allocation7 + $0x78] sm:$0xff]
        %v584 = vmul.f32 %v506, %v568
        %v585 = vmul.f32 %v509, %v569
        %v586 = vmul.f32 %v514, %v570
        %v587 = vmul.f32 %v517, %v571
        %v588 = vmul.f32 %v522, %v572
        %v589 = vmul.f32 %v525, %v573
        %v590 = vmul.f32 %v530, %v574
        %v591 = vmul.f32 %v533, %v575
        %v592 = vmul.f32 %v538, %v576
        %v593 = vmul.f32 %v541, %v577
        %v594 = vmul.f32 %v546, %v578
        %v595 = vmul.f32 %v549, %v579
        %v596 = vmul.f32 %v554, %v580
        %v597 = vmul.f32 %v557, %v581
        %v598 = vmul.f32 %v562, %v582
        %v599 = vmul.f32 %v565, %v583
        %v600 = vadd.f32 %v584, %v586
        %v601 = vadd.f32 %v600, %v588
        %v602 = vadd.f32 %v601, %v590
        %v603 = vadd.f32 %v602, %v592
        %v604 = vadd.f32 %v603, %v594
        %v605 = vadd.f32 %v604, %v596
        %v606 = vadd.f32 %v605, %v598
        %v607 = vadd.f32 %v585, %v587
        %v608 = vadd.f32 %v607, %v589
        %v609 = vadd.f32 %v608, %v591
        %v610 = vadd.f32 %v609, %v593
        %v611 = vadd.f32 %v610, %v595
        %v612 = vadd.f32 %v611, %v597
        %v613 = vadd.f32 %v612, %v599
        %614 = vst [vmem:[%s328] sm:$0xff] %v606
        %615 = vst [vmem:[%s328 + $0x8] sm:$0xff] %v613
        %v616 = vld [vmem:[%s344] sm:$0xf]
        %v617 = vld [vmem:[%s344 + $0x4] sm:$0xf]
        %v618 = vunpack.c.l.bf16 %v616
        %v619 = vunpack.c.l.bf16 %v617
        %v620 = vsub.f32 %v618, %v606
        %v621 = vsub.f32 %v619, %v613
        %v622 = vand.u32 2147483647, %v620
        %v623 = vand.u32 2147483647, %v621
        %v624 = vadd.f32 %v622, %v623
        %625 = vst [vmem:[%s335] sm:$0xff] %v624
        %s626 = sand.u32 %s171, 1
        %s627 = scalar_lea.sflag [#allocation4], %s626
        %s628 = sand.u32 %s171, 1
        %s629 = smul.addr %s628, 16
        %s630 = scalar_lea.vmem [#allocation8], %s629
        %s631 = sand.u32 %s197, 1
        %s632 = scalar_lea.sflag [#allocation10], %s631
        %s633 = sand.u32 %s197, 1
        %s634 = smul.addr %s633, 8
        %s635 = scalar_lea.vmem [#allocation9], %s634
        // Predicated region
        $region57: #{tpu_custom_call.1} parent=43 // pred_check
          %p636 = pneg %p181
        $region58: #{tpu_custom_call.1} parent=43 // pred_check_branch
          %638 = sbr.rel (%p636) target = $region60
        $region59: #{tpu_custom_call.1} parent=43 // pred_region
          %s640 = ssub.s32 256, 256
          %641 = vsyncadd %s627, %s640
          %s642 = smul.addr %s27, 2
          %s643 = smul.addr %s642, 128
          %s644 = scalar_lea.hbm %s6, %s643
          %s645 = sshll.u32 %s630, 4
          %s646 = int_to_ptr.vmem [resolvable:$true] %s645
          %651 = dma.vmem_to_hbm [thread:$0]  %s646, 256, %s644, %s627, 128, 128, 8
        $region60: #{tpu_custom_call.1} parent=43 // pred_fallthru
          _
        // Predicated region
        $region61: #{tpu_custom_call.1} parent=43 // pred_check
          %p652 = pneg %p207
        $region62: #{tpu_custom_call.1} parent=43 // pred_check_branch
          %654 = sbr.rel (%p652) target = $region64
        $region63: #{tpu_custom_call.1} parent=43 // pred_region
          %s656 = ssub.s32 128, 128
          %657 = vsyncadd %s632, %s656
          %s658 = smul.addr %s27, 128
          %s659 = scalar_lea.hbm %s7, %s658
          %s661 = sshll.u32 %s635, 4
          %s662 = int_to_ptr.vmem [resolvable:$true] %s661
          %664 = dma.vmem_to_hbm [thread:$0]  %s662, 128, %s659, %s632
        $region64: #{tpu_custom_call.1} parent=43 // pred_fallthru
          _
      $region44: #{tpu_custom_call.1} parent=5 // pred_fallthru
        _
      %p665 = scmp.le.s32.totalorder 2, %s22
      // Predicated region
      $region65: #{tpu_custom_call.1} parent=5 // pred_check
        %p666 = pneg %p665
      $region66: #{tpu_custom_call.1} parent=5 // pred_check_branch
        %668 = sbr.rel (%p666) target = $region68
      $region67: #{tpu_custom_call.1} parent=5 // pred_region
        %s669 = ssub.s32 %s22, 2
        // Predicated region
        $region69: #{tpu_custom_call.1} parent=67 // pred_check
          %p670 = pneg %p187
        $region70: #{tpu_custom_call.1} parent=67 // pred_check_branch
          %672 = sbr.rel (%p670) target = $region72
        $region71: #{tpu_custom_call.1} parent=67 // pred_region
          %s673 = sand.u32 %s172, 1
          %s674 = scalar_lea.sflag [#allocation4], %s673
          %s675 = sand.u32 %s172, 1
          %s676 = smul.addr %s675, 16
          %s677 = scalar_lea.vmem [#allocation8], %s676
          %678 = dma.done %s674, 256
        $region72: #{tpu_custom_call.1} parent=67 // pred_fallthru
          _
        // Predicated region
        $region73: #{tpu_custom_call.1} parent=67 // pred_check
          %p679 = pneg %p213
        $region74: #{tpu_custom_call.1} parent=67 // pred_check_branch
          %681 = sbr.rel (%p679) target = $region76
        $region75: #{tpu_custom_call.1} parent=67 // pred_region
          %s682 = sand.u32 %s198, 1
          %s683 = scalar_lea.sflag [#allocation10], %s682
          %s684 = sand.u32 %s198, 1
          %s685 = smul.addr %s684, 8
          %s686 = scalar_lea.vmem [#allocation9], %s685
          %687 = dma.done %s683, 128
        $region76: #{tpu_custom_call.1} parent=67 // pred_fallthru
          _
      $region68: #{tpu_custom_call.1} parent=5 // pred_fallthru
        _
    $region6: #{tpu_custom_call.1} parent=1 // loop_footer
      %s26 = sadd.s32 1, %s22
    $region7: #{tpu_custom_call.1} parent=1 // loop_footer_branch
      %21 = sbr.rel target = $region3
    $region8: #{tpu_custom_call.1} parent=1 // loop_exit
      _
    %688 = vsyncpa [#allocation3], 1
    %s689 = scalar_lea.sflag [#allocation3], 1
    %690 = vsyncpa %s689, 1
    %691 = vsyncpa [#allocation6], 1
    %692 = vsyncpa [#allocation4], 1
    %s693 = scalar_lea.sflag [#allocation4], 1
    %694 = vsyncpa %s693, 1
    %695 = vsyncpa [#allocation10], 1
    %s696 = scalar_lea.sflag [#allocation10], 1
    %697 = vsyncpa %s696, 1

// kernel: tpu_custom_call.1
$region0: #{tpu_custom_call.1}
  #allocation0 [shape = 'u32[]', space=smem, size = 0x4, offset = 0x4, fixed_abs, tag = 'smem constant byte address 0x4 - core index']
  #allocation1 [shape = 'u32[144,128]{1,0:T(1,128)}', space=vmem, size = 0x12000, scoped, tag = 'internal scratch']
  %s0 = inlined_call_operand.vmem [shape: bf16[16,8], index: 0, kind: input, shape index: {}]
  %s1 = inlined_call_operand.hbm [shape: bf16[8,256], index: 1, kind: input, shape index: {}]
  %s2 = inlined_call_operand.vmem [shape: f32[1,256], index: 2, kind: input, shape index: {}]
  %s3 = inlined_call_operand.hbm [shape: f32[8,128], index: 3, kind: input, shape index: {}]
  %s4 = inlined_call_operand.hbm [shape: f32[128,128], index: 4, kind: input, shape index: {}]
  %s5 = inlined_call_operand.vmem [shape: bf16[2,16,128], index: 5, kind: input, shape index: {}]
  %s6 = inlined_call_operand.hbm [shape: f32[2,16,128], index: 6, kind: output, shape index: {0}]
  %s7 = inlined_call_operand.hbm [shape: f32[2,8,128], index: 7, kind: output, shape index: {1}]
  %8 = xla_tuple %s6, %s7
  %s9 = sld [smem:[#allocation0]]
  $region77: #{tpu_custom_call.1} parent=0
    _
  %s11 = ssub.s32 1, %s9
  %s12 = scalar_select 0, %s11, %s9
  $region1: #{tpu_custom_call.1} parent=0
    #allocation2 [shape = 'u8[4096]{0}', space=vmem, size = 0x1000, scoped, tag = 'input window, operand 1, single buffered']
    #allocation3 [shape = 's32[2]{0}', space=sflag, size = 0x8, scoped, tag = 'scoped memory for tpu_custom_call.1']
    #allocation4 [shape = 's32[2]{0}', space=sflag, size = 0x8, scoped, tag = 'scoped memory for tpu_custom_call.1']
    #allocation5 [shape = 'u8[4096]{0}', space=vmem, size = 0x1000, scoped, tag = 'input window, operand 3, single buffered']
    #allocation6 [shape = 's32[1]{0}', space=sflag, size = 0x4, scoped, tag = 'scoped memory for tpu_custom_call.1']
    #allocation7 [shape = 'u8[65536]{0}', space=vmem, size = 0x10000, scoped, tag = 'input window, operand 4, single buffered']
    #allocation8 [shape = 'u8[16384]{0}', space=vmem, size = 0x4000, scoped, tag = 'output window, operand 0']
    #allocation9 [shape = 'u8[8192]{0}', space=vmem, size = 0x2000, scoped, tag = 'output window, operand 1']
    #allocation10 [shape = 's32[2]{0}', space=sflag, size = 0x8, scoped, tag = 'scoped memory for tpu_custom_call.1']
    %13 = vsyncpa [#allocation3], 0
    %14 = vsyncpa [#allocation6], 0
    %15 = vsyncpa [#allocation4], 0
    %s16 = scalar_lea.sflag [#allocation4], 1
    %17 = vsyncpa %s16, 0
    %18 = vsyncpa [#allocation10], 0
    %s19 = scalar_lea.sflag [#allocation10], 1
    %20 = vsyncpa %s19, 0
    loop: start=0, step=1, limit=4
    $region2: #{tpu_custom_call.1} parent=1 // loop_pre_header
      _
    $region3: #{tpu_custom_call.1} parent=1 // loop_header
      %s22 = sphi 0, %s26
      %p23 = scmp.ge.s32.totalorder %s22, 4
      %s32 = sphi 0, %s34
      %s35 = sphi 0, %s32
      %s36 = sphi 0, %s35
      %s52 = sphi 0, %s36
      %s56 = sphi 0, %s56
      %s58 = sphi 0, %s56
      %s59 = sphi 0, %s58
      %s73 = sphi 0, %s59
      %s77 = sphi 0, %s77
      %s79 = sphi 0, %s77
      %s80 = sphi 0, %s79
      %s94 = sphi 0, %s80
      %s98 = sphi 0, %s98
      %s100 = sphi 0, %s98
      %s101 = sphi 0, %s100
      %s115 = sphi 0, %s101
      %s119 = sphi 0, %s119
      %s121 = sphi 0, %s119
      %s122 = sphi 0, %s121
      %s136 = sphi 0, %s122
      %s142 = sphi 0, %s144
      %s145 = sphi 0, %s142
      %s146 = sphi 0, %s145
      %s162 = sphi 0, %s146
      %s168 = sphi 0, %s170
      %s171 = sphi 0, %s168
      %s172 = sphi 0, %s171
      %s188 = sphi 0, %s172
      %s194 = sphi 0, %s196
      %s197 = sphi 0, %s194
      %s198 = sphi 0, %s197
      %s214 = sphi 0, %s198
    $region4: #{tpu_custom_call.1} parent=1 // loop_header_branch
      %25 = sbr.rel (%p23) target = $region8
    $region5: #{tpu_custom_call.1} parent=1 // loop_body
      %s27 = ssub.s32 %s22, 1
      %s28 = ssub.s32 %s22, 2
      %s29 = sadd.s32 %s22, 1
      %s30 = ssub.s32 %s22, %s29
      %p31 = scmp.eq.s32.totalorder %s30, 0
      %s33 = sadd.s32 %s32, 1
      %s34 = scalar_select %p31, %s32, %s33
      %p37 = pneg %p31
      %p38 = scmp.eq.s32.totalorder %s22, 1
      %p39 = por %p37, %p38
      %p40 = scmp.ne.s32.totalorder %s32, %s35
      %p41 = scmp.eq.s32.totalorder %s22, 0
      %p42 = por %p40, %p41
      %p43 = scmp.ne.s32.totalorder %s32, %s35
      %p44 = scmp.eq.s32.totalorder %s27, 1
      %p45 = por %p43, %p44
      %p46 = scmp.ne.s32.totalorder %s35, %s36
      %p47 = scmp.eq.s32.totalorder %s27, 0
      %p48 = por %p46, %p47
      %p49 = scmp.ne.s32.totalorder %s35, %s36
      %p50 = scmp.eq.s32.totalorder %s28, 1
      %p51 = por %p49, %p50
      %p53 = scmp.ne.s32.totalorder %s36, %s52
      %p54 = scmp.eq.s32.totalorder %s28, 0
      %p55 = por %p53, %p54
      %s57 = sadd.s32 %s56, 1
      %p60 = scmp.eq.s32.totalorder %s22, 1
      %p61 = scmp.ne.s32.totalorder %s56, %s58
      %p62 = scmp.eq.s32.totalorder %s22, 0
      %p63 = por %p61, %p62
      %p64 = scmp.ne.s32.totalorder %s56, %s58
      %p65 = scmp.eq.s32.totalorder %s27, 1
      %p66 = por %p64, %p65
      %p67 = scmp.ne.s32.totalorder %s58, %s59
      %p68 = scmp.eq.s32.totalorder %s27, 0
      %p69 = por %p67, %p68
      %p70 = scmp.ne.s32.totalorder %s58, %s59
      %p71 = scmp.eq.s32.totalorder %s28, 1
      %p72 = por %p70, %p71
      %p74 = scmp.ne.s32.totalorder %s59, %s73
      %p75 = scmp.eq.s32.totalorder %s28, 0
      %p76 = por %p74, %p75
      %s78 = sadd.s32 %s77, 1
      %p81 = scmp.eq.s32.totalorder %s22, 1
      %p82 = scmp.ne.s32.totalorder %s77, %s79
      %p83 = scmp.eq.s32.totalorder %s22, 0
      %p84 = por %p82, %p83
      %p85 = scmp.ne.s32.totalorder %s77, %s79
      %p86 = scmp.eq.s32.totalorder %s27, 1
      %p87 = por %p85, %p86
      %p88 = scmp.ne.s32.totalorder %s79, %s80
      %p89 = scmp.eq.s32.totalorder %s27, 0
      %p90 = por %p88, %p89
      %p91 = scmp.ne.s32.totalorder %s79, %s80
      %p92 = scmp.eq.s32.totalorder %s28, 1
      %p93 = por %p91, %p92
      %p95 = scmp.ne.s32.totalorder %s80, %s94
      %p96 = scmp.eq.s32.totalorder %s28, 0
      %p97 = por %p95, %p96
      %s99 = sadd.s32 %s98, 1
      %p102 = scmp.eq.s32.totalorder %s22, 1
      %p103 = scmp.ne.s32.totalorder %s98, %s100
      %p104 = scmp.eq.s32.totalorder %s22, 0
      %p105 = por %p103, %p104
      %p106 = scmp.ne.s32.totalorder %s98, %s100
      %p107 = scmp.eq.s32.totalorder %s27, 1
      %p108 = por %p106, %p107
      %p109 = scmp.ne.s32.totalorder %s100, %s101
      %p110 = scmp.eq.s32.totalorder %s27, 0
      %p111 = por %p109, %p110
      %p112 = scmp.ne.s32.totalorder %s100, %s101
      %p113 = scmp.eq.s32.totalorder %s28, 1
      %p114 = por %p112, %p113
      %p116 = scmp.ne.s32.totalorder %s101, %s115
      %p117 = scmp.eq.s32.totalorder %s28, 0
      %p118 = por %p116, %p117
      %s120 = sadd.s32 %s119, 1
      %p123 = scmp.eq.s32.totalorder %s22, 1
      %p124 = scmp.ne.s32.totalorder %s119, %s121
      %p125 = scmp.eq.s32.totalorder %s22, 0
      %p126 = por %p124, %p125
      %p127 = scmp.ne.s32.totalorder %s119, %s121
      %p128 = scmp.eq.s32.totalorder %s27, 1
      %p129 = por %p127, %p128
      %p130 = scmp.ne.s32.totalorder %s121, %s122
      %p131 = scmp.eq.s32.totalorder %s27, 0
      %p132 = por %p130, %p131
      %p133 = scmp.ne.s32.totalorder %s121, %s122
      %p134 = scmp.eq.s32.totalorder %s28, 1
      %p135 = por %p133, %p134
      %p137 = scmp.ne.s32.totalorder %s122, %s136
      %p138 = scmp.eq.s32.totalorder %s28, 0
      %p139 = por %p137, %p138
      %s140 = ssub.s32 %s22, %s29
      %p141 = scmp.eq.s32.totalorder %s140, 0
      %s143 = sadd.s32 %s142, 1
      %s144 = scalar_select %p141, %s142, %s143
      %p147 = pneg %p141
      %p148 = scmp.eq.s32.totalorder %s22, 1
      %p149 = por %p147, %p148
      %p150 = scmp.ne.s32.totalorder %s142, %s145
      %p151 = scmp.eq.s32.totalorder %s22, 0
      %p152 = por %p150, %p151
      %p153 = scmp.ne.s32.totalorder %s142, %s145
      %p154 = scmp.eq.s32.totalorder %s27, 1
      %p155 = por %p153, %p154
      %p156 = scmp.ne.s32.totalorder %s145, %s146
      %p157 = scmp.eq.s32.totalorder %s27, 0
      %p158 = por %p156, %p157
      %p159 = scmp.ne.s32.totalorder %s145, %s146
      %p160 = scmp.eq.s32.totalorder %s28, 1
      %p161 = por %p159, %p160
      %p163 = scmp.ne.s32.totalorder %s146, %s162
      %p164 = scmp.eq.s32.totalorder %s28, 0
      %p165 = por %p163, %p164
      %s166 = ssub.s32 %s22, %s29
      %p167 = scmp.eq.s32.totalorder %s166, 0
      %s169 = sadd.s32 %s168, 1
      %s170 = scalar_select %p167, %s168, %s169
      %p173 = pneg %p167
      %p174 = scmp.eq.s32.totalorder %s22, 1
      %p175 = por %p173, %p174
      %p176 = scmp.ne.s32.totalorder %s168, %s171
      %p177 = scmp.eq.s32.totalorder %s22, 0
      %p178 = por %p176, %p177
      %p179 = scmp.ne.s32.totalorder %s168, %s171
      %p180 = scmp.eq.s32.totalorder %s27, 1
      %p181 = por %p179, %p180
      %p182 = scmp.ne.s32.totalorder %s171, %s172
      %p183 = scmp.eq.s32.totalorder %s27, 0
      %p184 = por %p182, %p183
      %p185 = scmp.ne.s32.totalorder %s171, %s172
      %p186 = scmp.eq.s32.totalorder %s28, 1
      %p187 = por %p185, %p186
      %p189 = scmp.ne.s32.totalorder %s172, %s188
      %p190 = scmp.eq.s32.totalorder %s28, 0
      %p191 = por %p189, %p190
      %s192 = ssub.s32 %s22, %s29
      %p193 = scmp.eq.s32.totalorder %s192, 0
      %s195 = sadd.s32 %s194, 1
      %s196 = scalar_select %p193, %s194, %s195
      %p199 = pneg %p193
      %p200 = scmp.eq.s32.totalorder %s22, 1
      %p201 = por %p199, %p200
      %p202 = scmp.ne.s32.totalorder %s194, %s197
      %p203 = scmp.eq.s32.totalorder %s22, 0
      %p204 = por %p202, %p203
      %p205 = scmp.ne.s32.totalorder %s194, %s197
      %p206 = scmp.eq.s32.totalorder %s27, 1
      %p207 = por %p205, %p206
      %p208 = scmp.ne.s32.totalorder %s197, %s198
      %p209 = scmp.eq.s32.totalorder %s27, 0
      %p210 = por %p208, %p209
      %p211 = scmp.ne.s32.totalorder %s197, %s198
      %p212 = scmp.eq.s32.totalorder %s28, 1
      %p213 = por %p211, %p212
      %p215 = scmp.ne.s32.totalorder %s198, %s214
      %p216 = scmp.eq.s32.totalorder %s28, 0
      %p217 = por %p215, %p216
      %p218 = scmp.le.s32.totalorder 1, %s22
      %p219 = scmp.lt.s32.totalorder %s22, 3
      %p220 = pnand %p218, %p219
      %p221 = pneg %p220
      // Predicated region
      $region9: #{tpu_custom_call.1} parent=5 // pred_check
        _
      $region10: #{tpu_custom_call.1} parent=5 // pred_check_branch
        %223 = sbr.rel (%p220) target = $region12
      $region11: #{tpu_custom_call.1} parent=5 // pred_region
        %s224 = ssub.s32 %s22, 1
        // Predicated region
        $region13: #{tpu_custom_call.1} parent=11 // pred_check
          %p225 = pneg %p69
        $region14: #{tpu_custom_call.1} parent=11 // pred_check_branch
          %227 = sbr.rel (%p225) target = $region16
        $region15: #{tpu_custom_call.1} parent=11 // pred_region
          %s229 = ssub.s32 128, 128
          %230 = vsyncadd [#allocation3], %s229
          %s232 = sshll.u32 [#allocation2], 4
          %s233 = int_to_ptr.vmem [resolvable:$true] %s232
          %235 = dma.hbm_to_vmem [thread:$0]  %s1, 128, %s233, [#allocation3]
        $region16: #{tpu_custom_call.1} parent=11 // pred_fallthru
          _
        // Predicated region
        $region17: #{tpu_custom_call.1} parent=11 // pred_check
          %p236 = pneg %p90
        $region18: #{tpu_custom_call.1} parent=11 // pred_check_branch
          %238 = sbr.rel (%p236) target = $region20
        $region19: #{tpu_custom_call.1} parent=11 // pred_region
          _
        $region20: #{tpu_custom_call.1} parent=11 // pred_fallthru
          _
        // Predicated region
        $region21: #{tpu_custom_call.1} parent=11 // pred_check
          %p239 = pneg %p111
        $region22: #{tpu_custom_call.1} parent=11 // pred_check_branch
          %241 = sbr.rel (%p239) target = $region24
        $region23: #{tpu_custom_call.1} parent=11 // pred_region
          %s243 = ssub.s32 128, 128
          %244 = vsyncadd [#allocation6], %s243
          %s246 = sshll.u32 [#allocation5], 4
          %s247 = int_to_ptr.vmem [resolvable:$true] %s246
          %249 = dma.hbm_to_vmem [thread:$0]  %s3, 128, %s247, [#allocation6]
        $region24: #{tpu_custom_call.1} parent=11 // pred_fallthru
          _
        // Predicated region
        $region25: #{tpu_custom_call.1} parent=11 // pred_check
          %p250 = pneg %p132
        $region26: #{tpu_custom_call.1} parent=11 // pred_check_branch
          %252 = sbr.rel (%p250) target = $region28
        $region27: #{tpu_custom_call.1} parent=11 // pred_region
          %s254 = ssub.s32 2048, 2048
          %255 = vsyncadd [#allocation6], %s254
          %s256 = sshll.u32 [#allocation7], 4
          %s257 = int_to_ptr.vmem [resolvable:$true] %s256
          %262 = dma.hbm_to_vmem [thread:$0]  %s4, 2048, %s257, [#allocation6], 128, 128, 8
        $region28: #{tpu_custom_call.1} parent=11 // pred_fallthru
          _
      $region12: #{tpu_custom_call.1} parent=5 // pred_fallthru
        _
      %p263 = scmp.lt.s32.totalorder %s22, 2
      // Predicated region
      $region29: #{tpu_custom_call.1} parent=5 // pred_check
        %p264 = pneg %p263
      $region30: #{tpu_custom_call.1} parent=5 // pred_check_branch
        %266 = sbr.rel (%p264) target = $region32
      $region31: #{tpu_custom_call.1} parent=5 // pred_region
        // Predicated region
        $region33: #{tpu_custom_call.1} parent=31 // pred_check
          %p267 = pneg %p42
        $region34: #{tpu_custom_call.1} parent=31 // pred_check_branch
          %269 = sbr.rel (%p267) target = $region36
        $region35: #{tpu_custom_call.1} parent=31 // pred_region
          %p270 = scmp.lt.s32.totalorder %s22, 1
          %s271 = scalar_select %p270, %s22, 1
          %s272 = smul.addr %s271, 4
          %s273 = scalar_lea.vmem %s0, %s272
        $region36: #{tpu_custom_call.1} parent=31 // pred_fallthru
          _
        // Predicated region
        $region37: #{tpu_custom_call.1} parent=31 // pred_check
          %p274 = pneg %p152
        $region38: #{tpu_custom_call.1} parent=31 // pred_check_branch
          %276 = sbr.rel (%p274) target = $region40
        $region39: #{tpu_custom_call.1} parent=31 // pred_region
          %p277 = scmp.lt.s32.totalorder %s22, 1
          %s278 = scalar_select %p277, %s22, 1
          %s279 = smul.addr %s278, 2
          %s280 = smul.addr %s279, 4
          %s281 = scalar_lea.vmem %s5, %s280
        $region40: #{tpu_custom_call.1} parent=31 // pred_fallthru
          _
      $region32: #{tpu_custom_call.1} parent=5 // pred_fallthru
        _
      %p282 = scmp.le.s32.totalorder 1, %s22
      %p283 = scmp.lt.s32.totalorder %s22, 3
      %p284 = pnand %p282, %p283
      %p285 = pneg %p284
      // Predicated region
      $region41: #{tpu_custom_call.1} parent=5 // pred_check
        _
      $region42: #{tpu_custom_call.1} parent=5 // pred_check_branch
        %287 = sbr.rel (%p284) target = $region44
      $region43: #{tpu_custom_call.1} parent=5 // pred_region
        %s288 = ssub.s32 %s22, 1
        // Predicated region
        $region45: #{tpu_custom_call.1} parent=43 // pred_check
          %p289 = pneg %p69
        $region46: #{tpu_custom_call.1} parent=43 // pred_check_branch
          %291 = sbr.rel (%p289) target = $region48
        $region47: #{tpu_custom_call.1} parent=43 // pred_region
          %292 = dma.done [#allocation3], 128
        $region48: #{tpu_custom_call.1} parent=43 // pred_fallthru
          _
        // Predicated region
        $region49: #{tpu_custom_call.1} parent=43 // pred_check
          %p293 = pneg %p111
        $region50: #{tpu_custom_call.1} parent=43 // pred_check_branch
          %295 = sbr.rel (%p293) target = $region52
        $region51: #{tpu_custom_call.1} parent=43 // pred_region
          %296 = dma.done [#allocation6], 128
        $region52: #{tpu_custom_call.1} parent=43 // pred_fallthru
          _
        // Predicated region
        $region53: #{tpu_custom_call.1} parent=43 // pred_check
          %p297 = pneg %p132
        $region54: #{tpu_custom_call.1} parent=43 // pred_check_branch
          %299 = sbr.rel (%p297) target = $region56
        $region55: #{tpu_custom_call.1} parent=43 // pred_region
          %300 = dma.done [#allocation6], 2048
        $region56: #{tpu_custom_call.1} parent=43 // pred_fallthru
          _
        %p301 = scmp.lt.s32.totalorder %s27, 1
        %s302 = scalar_select %p301, %s27, 1
        %s303 = smul.addr %s302, 4
        %s304 = scalar_lea.vmem %s0, %s303
        %p305 = pneg %p48
        %p306 = pneg %p45
        %p307 = pneg %p69
        %p308 = pneg %p66
        %p309 = pneg %p90
        %p310 = pneg %p87
        %p311 = pneg %p111
        %p312 = pneg %p108
        %p313 = pneg %p132
        %p314 = pneg %p129
        %p315 = scmp.lt.s32.totalorder %s27, 1
        %s316 = scalar_select %p315, %s27, 1
        %s317 = smul.addr %s316, 2
        %s318 = smul.addr %s317, 4
        %s319 = scalar_lea.vmem %s5, %s318
        %p320 = pneg %p158
        %p321 = pneg %p155
        %p322 = pneg %p184
        %p323 = pneg %p181
        %s324 = sand.u32 %s171, 1
        %s325 = scalar_lea.sflag [#allocation4], %s324
        %s326 = sand.u32 %s171, 1
        %s327 = smul.addr %s326, 16
        %s328 = scalar_lea.vmem [#allocation8], %s327
        %p329 = pneg %p210
        %p330 = pneg %p207
        %s331 = sand.u32 %s197, 1
        %s332 = scalar_lea.sflag [#allocation10], %s331
        %s333 = sand.u32 %s197, 1
        %s334 = smul.addr %s333, 8
        %s335 = scalar_lea.vmem [#allocation9], %s334
        %p336 = scmp.lt.s32.totalorder %s27, 1
        %s337 = scalar_select %p336, %s27, 1
        %s338 = smul.addr %s337, 4
        %s339 = scalar_lea.vmem %s0, %s338
        %p340 = scmp.lt.s32.totalorder %s27, 1
        %s341 = scalar_select %p340, %s27, 1
        %s342 = smul.addr %s341, 2
        %s343 = smul.addr %s342, 4
        %s344 = scalar_lea.vmem %s5, %s343
        %v346 = vld [vmem:[%s339] sm:$0xf]
        %v347 = vld [vmem:[#allocation2] sm:$0xff]
        %v348 = vld [vmem:[%s2] sm:$0x3]
        %v350 = vlaneseq
        %v351 = vshrl.u32 %v350, 7
        %v352 = vsub.s32 0, %v351
        %v353 = vrot.slane %v348, %v352
        %v354 = vlaneseq
        %v355 = vshrl.u32 %v354, 7
        %v356 = vsub.s32 1, %v355
        %v357 = vrot.slane %v348, %v356
        %v361 = vunpack.c.l.b16 %v347
        %v362 = vunpack.c.h.b16 %v347
        %v363 = vpack.c.b16 %v361, %v361
        %v364 = vpack.c.b16 %v362, %v362
        %vm365 = vcmask 64512
        %v367 = vsel %vm365, %v346, 0
        %vm369 = vcmask 1043456
        %v371 = vsel %vm369, %v363, 0
        %v374 = vsel %vm369, %v364, 0
        %376 = vmatprep.subr.bf16.mxu0 0
        %377 = vmatpush1.bf16.msra.mxu0 0
        %378 = vmatprep.subr.bf16.mxu0 0
        %379 = vmatpush1.bf16.msra.mxu0 0
        %380 = vmatprep.subr.bf16.mxu0 0
        %381 = vmatpush1.bf16.msra.mxu0 0
        %382 = vmatprep.subr.bf16.mxu0 0
        %383 = vmatpush1.bf16.msra.mxu0 0
        %384 = vmatprep.subr.bf16.mxu0 0
        %385 = vmatpush1.bf16.msra.mxu0 0
        %386 = vmatprep.subr.bf16.mxu0 0
        %387 = vmatpush1.bf16.msra.mxu0 0
        %388 = vmatprep.subr.bf16.mxu0 0
        %389 = vmatpush1.bf16.msra.mxu0 0
        %390 = vmatprep.subr.bf16.mxu0 %v374
        %391 = vmatpush1.bf16.msra.mxu0 %v371
        %392 = vmatprep.subr.bf16.mxu0 0
        %393 = vmatpush2.bf16.msra.mxu0 0
        %394 = vmatprep.subr.bf16.mxu0 0
        %395 = vmatpush2.bf16.msra.mxu0 0
        %396 = vmatprep.subr.bf16.mxu0 0
        %397 = vmatpush2.bf16.msra.mxu0 0
        %398 = vmatprep.subr.bf16.mxu0 0
        %399 = vmatpush2.bf16.msra.mxu0 0
        %400 = vmatprep.subr.bf16.mxu0 0
        %401 = vmatpush2.bf16.msra.mxu0 0
        %402 = vmatprep.subr.bf16.mxu0 0
        %403 = vmatpush2.bf16.msra.mxu0 0
        %404 = vmatprep.subr.bf16.mxu0 0
        %405 = vmatpush2.bf16.msra.mxu0 0
        %406 = vmatprep.subr.bf16.mxu0 0
        %407 = vmatpush2.bf16.msra.mxu0 0
        %408 = vmatprep.mubr.bf16.mxu0 0
        %409 = vmatmul.mubr.bf16.gmra.mxu0 %v367
        %v410 = vpop.f32.mrf.mxu0
        %v411 = vadd.f32 %v353, %v410
        %v412 = vpop.f32.mrf.mxu0
        %v413 = vadd.f32 %v357, %v412
        %v414 = vpop.f32.mrf.mxu0
        %v415 = vpop.f32.mrf.mxu0
        %416 = vdwg.mxu0
        %v417 = vxor.u32 %v411, 2147483648
        %v418 = vmul.f32 %v417, 1.442695
        %v419 = vpow.pop %v418
        %v420 = vadd.f32 %v419, 1.0
        %v421 = vrcp.pop %v420
        %v422 = vmul.f32 1.0, %v421
        %v423 = vmul.f32 %v411, %v422
        %v424 = vld [vmem:[#allocation5] sm:$0xff]
        %v425 = vmul.f32 %v423, %v424
        %v426 = vpack.c.bf16 %v425, %v425
        %v427 = vpack.c.bf16 %v413, %v413
        %428 = vxpose.xlu0.c.b16.start [1/8] %v426, 128
        %429 = vxpose.xlu0.c.b16.cont [2/8] 0, 128
        %430 = vxpose.xlu0.c.b16.cont [3/8] 0, 128
        %431 = vxpose.xlu0.c.b16.cont [4/8] 0, 128
        %432 = vxpose.xlu0.c.b16.cont [5/8] 0, 128
        %433 = vxpose.xlu0.c.b16.cont [6/8] 0, 128
        %434 = vxpose.xlu0.c.b16.cont [7/8] 0, 128
        %435 = vxpose.xlu0.c.b16.end [8/8] 0, 128
        %v436 = vpop.trf.xlu0
        %v437 = vpop.trf.xlu0
        %v438 = vpop.trf.xlu0
        %v439 = vpop.trf.xlu0
        %v440 = vpop.trf.xlu0
        %v441 = vpop.trf.xlu0
        %v442 = vpop.trf.xlu0
        %v443 = vpop.trf.xlu0
        %v445 = vsel %vm365, %v436, 0
        %v448 = vsel %vm365, %v437, 0
        %v451 = vsel %vm365, %v438, 0
        %v454 = vsel %vm365, %v439, 0
        %v457 = vsel %vm365, %v440, 0
        %v460 = vsel %vm365, %v441, 0
        %v463 = vsel %vm365, %v442, 0
        %v466 = vsel %vm365, %v443, 0
        %v469 = vsel %vm369, %v427, 0
        %471 = vmatprep.subr.bf16.mxu0 0
        %472 = vmatpush1.bf16.msra.mxu0 0
        %473 = vmatprep.subr.bf16.mxu0 0
        %474 = vmatpush1.bf16.msra.mxu0 0
        %475 = vmatprep.subr.bf16.mxu0 0
        %476 = vmatpush1.bf16.msra.mxu0 0
        %477 = vmatprep.subr.bf16.mxu0 0
        %478 = vmatpush1.bf16.msra.mxu0 0
        %479 = vmatprep.subr.bf16.mxu0 0
        %480 = vmatpush1.bf16.msra.mxu0 0
        %481 = vmatprep.subr.bf16.mxu0 0
        %482 = vmatpush1.bf16.msra.mxu0 0
        %483 = vmatprep.subr.bf16.mxu0 0
        %484 = vmatpush1.bf16.msra.mxu0 0
        %485 = vmatprep.subr.bf16.mxu0 0
        %486 = vmatpush1.bf16.msra.mxu0 %v469
        %487 = vmatprep.subr.bf16.mxu0 0
        %488 = vmatpush2.bf16.msra.mxu0 0
        %489 = vmatprep.subr.bf16.mxu0 0
        %490 = vmatpush2.bf16.msra.mxu0 0
        %491 = vmatprep.subr.bf16.mxu0 0
        %492 = vmatpush2.bf16.msra.mxu0 0
        %493 = vmatprep.subr.bf16.mxu0 0
        %494 = vmatpush2.bf16.msra.mxu0 0
        %495 = vmatprep.subr.bf16.mxu0 0
        %496 = vmatpush2.bf16.msra.mxu0 0
        %497 = vmatprep.subr.bf16.mxu0 0
        %498 = vmatpush2.bf16.msra.mxu0 0
        %499 = vmatprep.subr.bf16.mxu0 0
        %500 = vmatpush2.bf16.msra.mxu0 0
        %501 = vmatprep.subr.bf16.mxu0 0
        %502 = vmatpush2.bf16.msra.mxu0 0
        %503 = vmatprep.mubr.bf16.mxu0 0
        %504 = vmatmul.mubr.bf16.gmra.mxu0 %v445
        %v505 = vpop.f32.mrf.mxu0
        %v506 = vadd.f32 0.0, %v505
        %v507 = vpop.f32.mrf.mxu0
        %v508 = vpop.f32.mrf.mxu0
        %v509 = vadd.f32 0.0, %v508
        %v510 = vpop.f32.mrf.mxu0
        %511 = vmatprep.mubr.bf16.mxu0 0
        %512 = vmatmul.mubr.bf16.gmra.mxu0 %v448
        %v513 = vpop.f32.mrf.mxu0
        %v514 = vadd.f32 0.0, %v513
        %v515 = vpop.f32.mrf.mxu0
        %v516 = vpop.f32.mrf.mxu0
        %v517 = vadd.f32 0.0, %v516
        %v518 = vpop.f32.mrf.mxu0
        %519 = vmatprep.mubr.bf16.mxu0 0
        %520 = vmatmul.mubr.bf16.gmra.mxu0 %v451
        %v521 = vpop.f32.mrf.mxu0
        %v522 = vadd.f32 0.0, %v521
        %v523 = vpop.f32.mrf.mxu0
        %v524 = vpop.f32.mrf.mxu0
        %v525 = vadd.f32 0.0, %v524
        %v526 = vpop.f32.mrf.mxu0
        %527 = vmatprep.mubr.bf16.mxu0 0
        %528 = vmatmul.mubr.bf16.gmra.mxu0 %v454
        %v529 = vpop.f32.mrf.mxu0
        %v530 = vadd.f32 0.0, %v529
        %v531 = vpop.f32.mrf.mxu0
        %v532 = vpop.f32.mrf.mxu0
        %v533 = vadd.f32 0.0, %v532
        %v534 = vpop.f32.mrf.mxu0
        %535 = vmatprep.mubr.bf16.mxu0 0
        %536 = vmatmul.mubr.bf16.gmra.mxu0 %v457
        %v537 = vpop.f32.mrf.mxu0
        %v538 = vadd.f32 0.0, %v537
        %v539 = vpop.f32.mrf.mxu0
        %v540 = vpop.f32.mrf.mxu0
        %v541 = vadd.f32 0.0, %v540
        %v542 = vpop.f32.mrf.mxu0
        %543 = vmatprep.mubr.bf16.mxu0 0
        %544 = vmatmul.mubr.bf16.gmra.mxu0 %v460
        %v545 = vpop.f32.mrf.mxu0
        %v546 = vadd.f32 0.0, %v545
        %v547 = vpop.f32.mrf.mxu0
        %v548 = vpop.f32.mrf.mxu0
        %v549 = vadd.f32 0.0, %v548
        %v550 = vpop.f32.mrf.mxu0
        %551 = vmatprep.mubr.bf16.mxu0 0
        %552 = vmatmul.mubr.bf16.gmra.mxu0 %v463
        %v553 = vpop.f32.mrf.mxu0
        %v554 = vadd.f32 0.0, %v553
        %v555 = vpop.f32.mrf.mxu0
        %v556 = vpop.f32.mrf.mxu0
        %v557 = vadd.f32 0.0, %v556
        %v558 = vpop.f32.mrf.mxu0
        %559 = vmatprep.mubr.bf16.mxu0 0
        %560 = vmatmul.mubr.bf16.gmra.mxu0 %v466
        %v561 = vpop.f32.mrf.mxu0
        %v562 = vadd.f32 0.0, %v561
        %v563 = vpop.f32.mrf.mxu0
        %v564 = vpop.f32.mrf.mxu0
        %v565 = vadd.f32 0.0, %v564
        %v566 = vpop.f32.mrf.mxu0
        %567 = vdwg.mxu0
        %v568 = vld [vmem:[#allocation7] sm:$0xff]
        %v569 = vld [vmem:[#allocation7 + $0x8] sm:$0xff]
        %v570 = vld [vmem:[#allocation7 + $0x10] sm:$0xff]
        %v571 = vld [vmem:[#allocation7 + $0x18] sm:$0xff]
        %v572 = vld [vmem:[#allocation7 + $0x20] sm:$0xff]
        %v573 = vld [vmem:[#allocation7 + $0x28] sm:$0xff]
        %v574 = vld [vmem:[#allocation7 + $0x30] sm:$0xff]
        %v575 = vld [vmem:[#allocation7 + $0x38] sm:$0xff]
        %v576 = vld [vmem:[#allocation7 + $0x40] sm:$0xff]
        %v577 = vld [vmem:[#allocation7 + $0x48] sm:$0xff]
        %v578 = vld [vmem:[#allocation7 + $0x50] sm:$0xff]
        %v579 = vld [vmem:[#allocation7 + $0x58] sm:$0xff]
        %v580 = vld [vmem:[#allocation7 + $0x60] sm:$0xff]
        %v581 = vld [vmem:[#allocation7 + $0x68] sm:$0xff]
        %v582 = vld [vmem:[#allocation7 + $0x70] sm:$0xff]
        %v583 = vld [vmem:[#allocation7 + $0x78] sm:$0xff]
        %v584 = vmul.f32 %v506, %v568
        %v585 = vmul.f32 %v509, %v569
        %v586 = vmul.f32 %v514, %v570
        %v587 = vmul.f32 %v517, %v571
        %v588 = vmul.f32 %v522, %v572
        %v589 = vmul.f32 %v525, %v573
        %v590 = vmul.f32 %v530, %v574
        %v591 = vmul.f32 %v533, %v575
        %v592 = vmul.f32 %v538, %v576
        %v593 = vmul.f32 %v541, %v577
        %v594 = vmul.f32 %v546, %v578
        %v595 = vmul.f32 %v549, %v579
        %v596 = vmul.f32 %v554, %v580
        %v597 = vmul.f32 %v557, %v581
        %v598 = vmul.f32 %v562, %v582
        %v599 = vmul.f32 %v565, %v583
        %v600 = vadd.f32 %v584, %v586
        %v601 = vadd.f32 %v600, %v588
        %v602 = vadd.f32 %v601, %v590
        %v603 = vadd.f32 %v602, %v592
        %v604 = vadd.f32 %v603, %v594
        %v605 = vadd.f32 %v604, %v596
        %v606 = vadd.f32 %v605, %v598
        %v607 = vadd.f32 %v585, %v587
        %v608 = vadd.f32 %v607, %v589
        %v609 = vadd.f32 %v608, %v591
        %v610 = vadd.f32 %v609, %v593
        %v611 = vadd.f32 %v610, %v595
        %v612 = vadd.f32 %v611, %v597
        %v613 = vadd.f32 %v612, %v599
        %614 = vst [vmem:[%s328] sm:$0xff] %v606
        %615 = vst [vmem:[%s328 + $0x8] sm:$0xff] %v613
        %v616 = vld [vmem:[%s344] sm:$0xf]
        %v617 = vld [vmem:[%s344 + $0x4] sm:$0xf]
        %v618 = vunpack.c.l.bf16 %v616
        %v619 = vunpack.c.l.bf16 %v617
        %v620 = vsub.f32 %v618, %v606
        %v621 = vsub.f32 %v619, %v613
        %v622 = vand.u32 2147483647, %v620
        %v623 = vand.u32 2147483647, %v621
        %v624 = vadd.f32 %v622, %v623
        %625 = vst [vmem:[%s335] sm:$0xff] %v624
        %s626 = sand.u32 %s171, 1
        %s627 = scalar_lea.sflag [#allocation4], %s626
        %s628 = sand.u32 %s171, 1
        %s629 = smul.addr %s628, 16
        %s630 = scalar_lea.vmem [#allocation8], %s629
        %s631 = sand.u32 %s197, 1
        %s632 = scalar_lea.sflag [#allocation10], %s631
        %s633 = sand.u32 %s197, 1
        %s634 = smul.addr %s633, 8
        %s635 = scalar_lea.vmem [#allocation9], %s634
        // Predicated region
        $region57: #{tpu_custom_call.1} parent=43 // pred_check
          %p636 = pneg %p181
        $region58: #{tpu_custom_call.1} parent=43 // pred_check_branch
          %638 = sbr.rel (%p636) target = $region60
        $region59: #{tpu_custom_call.1} parent=43 // pred_region
          %s640 = ssub.s32 256, 256
          %641 = vsyncadd %s627, %s640
          %s642 = smul.addr %s27, 2
          %s643 = smul.addr %s642, 128
          %s644 = scalar_lea.hbm %s6, %s643
          %s645 = sshll.u32 %s630, 4
          %s646 = int_to_ptr.vmem [resolvable:$true] %s645
          %651 = dma.vmem_to_hbm [thread:$0]  %s646, 256, %s644, %s627, 128, 128, 8
        $region60: #{tpu_custom_call.1} parent=43 // pred_fallthru
          _
        // Predicated region
        $region61: #{tpu_custom_call.1} parent=43 // pred_check
          %p652 = pneg %p207
        $region62: #{tpu_custom_call.1} parent=43 // pred_check_branch
          %654 = sbr.rel (%p652) target = $region64
        $region63: #{tpu_custom_call.1} parent=43 // pred_region
          %s656 = ssub.s32 128, 128
          %657 = vsyncadd %s632, %s656
          %s658 = smul.addr %s27, 128
          %s659 = scalar_lea.hbm %s7, %s658
          %s661 = sshll.u32 %s635, 4
          %s662 = int_to_ptr.vmem [resolvable:$true] %s661
          %664 = dma.vmem_to_hbm [thread:$0]  %s662, 128, %s659, %s632
        $region64: #{tpu_custom_call.1} parent=43 // pred_fallthru
          _
      $region44: #{tpu_custom_call.1} parent=5 // pred_fallthru
        _
      %p665 = scmp.le.s32.totalorder 2, %s22
      // Predicated region
      $region65: #{tpu_custom_call.1} parent=5 // pred_check
        %p666 = pneg %p665
      $region66: #{tpu_custom_call.1} parent=5 // pred_check_branch
        %668 = sbr.rel (%p666) target = $region68
      $region67: #{tpu_custom_call.1} parent=5 // pred_region
        %s669 = ssub.s32 %s22, 2
        // Predicated region
        $region69: #{tpu_custom_call.1} parent=67 // pred_check
          %p670 = pneg %p187
        $region70: #{tpu_custom_call.1} parent=67 // pred_check_branch
          %672 = sbr.rel (%p670) target = $region72
        $region71: #{tpu_custom_call.1} parent=67 // pred_region
          %s673 = sand.u32 %s172, 1
          %s674 = scalar_lea.sflag [#allocation4], %s673
          %s675 = sand.u32 %s172, 1
          %s676 = smul.addr %s675, 16
          %s677 = scalar_lea.vmem [#allocation8], %s676
          %678 = dma.done %s674, 256
        $region72: #{tpu_custom_call.1} parent=67 // pred_fallthru
          _
        // Predicated region
        $region73: #{tpu_custom_call.1} parent=67 // pred_check
          %p679 = pneg %p213
        $region74: #{tpu_custom_call.1} parent=67 // pred_check_branch
          %681 = sbr.rel (%p679) target = $region76
        $region75: #{tpu_custom_call.1} parent=67 // pred_region
          %s682 = sand.u32 %s198, 1
          %s683 = scalar_lea.sflag [#allocation10], %s682
          %s684 = sand.u32 %s198, 1
          %s685 = smul.addr %s684, 8
          %s686 = scalar_lea.vmem [#allocation9], %s685
          %687 = dma.done %s683, 128
        $region76: #{tpu_custom_call.1} parent=67 // pred_fallthru
          _
      $region68: #{tpu_custom_call.1} parent=5 // pred_fallthru
        _
    $region6: #{tpu_custom_call.1} parent=1 // loop_footer
      %s26 = sadd.s32 1, %s22
    $region7: #{tpu_custom_call.1} parent=1 // loop_footer_branch
      %21 = sbr.rel target = $region3
    $region8: #{tpu_custom_call.1} parent=1 // loop_exit
      _
    %688 = vsyncpa [#allocation3], 1
    %s689 = scalar_lea.sflag [#allocation3], 1
    %690 = vsyncpa %s689, 1
    %691 = vsyncpa [#allocation6], 1
    %692 = vsyncpa [#allocation4], 1
    %s693 = scalar_lea.sflag [#allocation4], 1
    %694 = vsyncpa %s693, 1
    %695 = vsyncpa [#allocation10], 1
    %s696 = scalar_lea.sflag [#allocation10], 1
    %697 = vsyncpa %s696, 1

</llo_original>
